<compile_context>
chip_gen: v5e
topology: v5e:2x2
jax: 0.10.0
libtpu: 0.0.40
codegen_flags: <defaults>
</compile_context>

<pallas_src>
import numpy as np
import jax
import jax.numpy as jnp
from jax.experimental import pallas as pl
from jax.experimental.pallas import tpu as pltpu

BN_EPS = 1e-5


# ------------------------------ fused kernel --------------------------------

def _pnet_fused_kernel(alpha_ref, x_ref,
                       r1_ref, w1_ref, g1_ref, be1_ref, f1_ref, f1t_ref,
                       rp_ref, sp_ref,
                       r2_ref, w2_ref, g2_ref, be2_ref, f2_ref, f2t_ref,
                       r3_ref, w3_ref, b3_ref,
                       wh_ref, bh_ref, cmask_ref,
                       out_ref):
    mm = lambda a, b: jnp.dot(a, b, preferred_element_type=jnp.float32)

    def conv(x, r_ref, w_ref):
        # valid 3x3 conv in row-strip layout: sum over row-shift taps of
        # (row-select @ x) @ tap-weight  (all 2-D matmuls)
        k = r_ref.shape[0]
        y = mm(mm(r_ref[0], x), w_ref[0])
        for ki in range(1, k):
            y = y + mm(mm(r_ref[ki], x), w_ref[ki])
        return y

    def bn_prelu(y, gamma, beta, fold, foldt, alpha):
        # training-mode BatchNorm: per-channel batch stats over (N, OH, OW)
        rows = y.shape[0]                       # N * OH
        ow = fold.shape[0] // fold.shape[1]     # OW
        count = rows * ow
        s1 = mm(jnp.sum(y, axis=0, keepdims=True), fold)        # [1, OC]
        s2 = mm(jnp.sum(y * y, axis=0, keepdims=True), fold)    # [1, OC]
        mean = s1 / count
        var = s2 / count - mean * mean                           # biased
        scale = gamma * jax.lax.rsqrt(var + BN_EPS)
        shift = beta - mean * scale
        yn = y * mm(scale, foldt) + mm(shift, foldt)             # broadcast back
        return jnp.where(yn >= 0.0, yn, alpha * yn)              # PReLU

    a1 = alpha_ref[0]
    a2 = alpha_ref[1]
    a3 = alpha_ref[2]

    x = x_ref[...]                                               # [N*H, W*3]

    # conv1 (3x3, 3->6; bias dropped: no-op under batch-stat BN) + BN + PReLU
    y1 = bn_prelu(conv(x, r1_ref, w1_ref),
                  g1_ref[...], be1_ref[...], f1_ref[...], f1t_ref[...], a1)

    # MaxPool2d(2, 2): row/column selection matmuls + elementwise max
    c0 = mm(y1, sp_ref[0])
    c1 = mm(y1, sp_ref[1])
    p = jnp.maximum(jnp.maximum(mm(rp_ref[0], c0), mm(rp_ref[0], c1)),
                    jnp.maximum(mm(rp_ref[1], c0), mm(rp_ref[1], c1)))

    # conv2 (3x3, 6->16) + BN + PReLU
    y2 = bn_prelu(conv(p, r2_ref, w2_ref),
                  g2_ref[...], be2_ref[...], f2_ref[...], f2t_ref[...], a2)

    # conv3 (3x3, 16->64) + bias + PReLU  (output rows padded to multiple of 8)
    y3 = conv(y2, r3_ref, w3_ref) + b3_ref[...]
    y3 = jnp.where(y3 >= 0.0, y3, a3 * y3)

    # fused 1x1 heads (cond | offset), block-diagonal weights padded to 128
    # lanes -> one aligned (8,128) unmasked store; sigmoid only on cond cols.
    yh = mm(y3, wh_ref[...]) + bh_ref[...]
    out_ref[...] = jnp.where(cmask_ref[...] > 0.5, jax.nn.sigmoid(yh), yh)


# --------------------- constant selection/fold matrices ---------------------

def _conv_row_select(N, H, OH, k, out_rows=None):
    rows = N * OH if out_rows is None else out_rows
    R = np.zeros((k, rows, N * H), np.float32)
    for ki in range(k):
        for n in range(N):
            for oh in range(OH):
                R[ki, n * OH + oh, n * H + oh + ki] = 1.0
    return R


def _conv_tap_weights(w, W_in, OW):
    # w: [KH, KW, IC, OC] -> per-row-tap weights [k, W_in*IC, OW*OC]
    k, _, IC, OC = w.shape
    Wt = np.zeros((k, W_in * IC, OW * OC), np.float32)
    for ki in range(k):
        for ow in range(OW):
            for kj in range(k):
                wc = ow + kj
                Wt[ki, wc * IC:(wc + 1) * IC, ow * OC:(ow + 1) * OC] = w[ki, kj]
    return Wt


def _pool_selectors(N, H, W, C):
    # MaxPool2d(kernel=2, stride=2) row / column selection matrices
    OH, OW = H // 2, W // 2
    R = np.zeros((2, N * OH, N * H), np.float32)
    S = np.zeros((2, W * C, OW * C), np.float32)
    for t in range(2):
        for n in range(N):
            for oh in range(OH):
                R[t, n * OH + oh, n * H + 2 * oh + t] = 1.0
        for ow in range(OW):
            for c in range(C):
                S[t, (2 * ow + t) * C + c, ow * C + c] = 1.0
    return R, S


def _chan_fold(OW, OC):
    # fold interleaved [*, OW*OC] columns to per-channel [*, OC] (and back)
    F = np.zeros((OW * OC, OC), np.float32)
    for ow in range(OW):
        for oc in range(OC):
            F[ow * OC + oc, oc] = 1.0
    return F, np.ascontiguousarray(F.T)


def _head_blockdiag(wh, bh, OW, pad_cols):
    # wh: [64, 5] (cond col 0, offset cols 1:5); block-diag over OW positions
    IC, HC = wh.shape
    Wbd = np.zeros((OW * IC, pad_cols), np.float32)
    bfull = np.zeros((1, pad_cols), np.float32)
    mask = np.zeros((1, pad_cols), np.float32)
    for ow in range(OW):
        Wbd[ow * IC:(ow + 1) * IC, ow * HC:(ow + 1) * HC] = wh
        bfull[0, ow * HC:(ow + 1) * HC] = bh
        mask[0, ow * HC] = 1.0          # sigmoid (cond) column
    return Wbd, bfull, mask


# ------------------------------ parameters ----------------------------------

def init_params(key):
    ks = jax.random.split(key, 7)
    nrm = lambda k, shape, s=0.1: s * jax.random.normal(k, shape, dtype=jnp.float32)
    p = {}
    # conv weights stored as [KH, KW, IC, OC]
    p["w1"] = nrm(ks[0], (3, 3, 3, 6))
    p["g1"] = jnp.ones((1, 6), jnp.float32);   p["be1"] = jnp.zeros((1, 6), jnp.float32)
    p["w2"] = nrm(ks[1], (3, 3, 6, 16))
    p["g2"] = jnp.ones((1, 16), jnp.float32);  p["be2"] = jnp.zeros((1, 16), jnp.float32)
    p["w3"] = nrm(ks[2], (3, 3, 16, 64));      p["b3"] = nrm(ks[3], (64,), 0.05)
    p["wc"] = nrm(ks[4], (64, 1));             p["bc"] = jnp.zeros((1,), jnp.float32)
    p["wo"] = nrm(ks[5], (64, 4));             p["bo"] = nrm(ks[6], (4,), 0.05)
    # nn.PReLU() default: one shared alpha per module, init 0.25
    p["alpha"] = jnp.full((3,), 0.25, jnp.float32)
    # conv1/conv2 biases omitted on purpose: exact no-op under training-mode BN.
    return p


def build_pnet_operands(params, N, H, W):
    oh1, ow1 = H - 2, W - 2          # conv1 (3x3 valid)
    ohp, owp = oh1 // 2, ow1 // 2    # maxpool 2x2 / 2
    oh2, ow2 = ohp - 2, owp - 2      # conv2
    oh3, ow3 = oh2 - 2, ow2 - 2      # conv3 / heads
    assert oh3 >= 1 and ow3 >= 1, "input too small for PNet"
    out_rows = max(8, ((N * oh3 + 7) // 8) * 8)
    out_cols = max(128, ((ow3 * 5 + 127) // 128) * 128)

    g = lambda a: np.asarray(jax.device_get(a), np.float32)
    w1, w2, w3 = g(params["w1"]), g(params["w2"]), g(params["w3"])
    wh = np.concatenate([g(params["wc"]), g(params["wo"])], axis=1)   # [64, 5]
    bh = np.concatenate([g(params["bc"]), g(params["bo"])], axis=0)   # [5]

    R1 = _conv_row_select(N, H, oh1, 3)
    W1m = _conv_tap_weights(w1, W, ow1)
    F1, F1T = _chan_fold(ow1, 6)
    Rp, Sp = _pool_selectors(N, oh1, ow1, 6)
    R2 = _conv_row_select(N, ohp, oh2, 3)
    W2m = _conv_tap_weights(w2, owp, ow2)
    F2, F2T = _chan_fold(ow2, 16)
    R3 = _conv_row_select(N, oh2, oh3, 3, out_rows=out_rows)
    W3m = _conv_tap_weights(w3, ow2, ow3)
    b3full = np.tile(g(params["b3"]), ow3)[None, :]                    # [1, ow3*64]
    Whbd, bhfull, cmask = _head_blockdiag(wh, bh, ow3, out_cols)

    j = jnp.asarray
    operands = [
        params["alpha"],                                   # SMEM scalars
        j(R1), j(W1m), params["g1"], params["be1"], j(F1), j(F1T),
        j(Rp), j(Sp),
        j(R2), j(W2m), params["g2"], params["be2"], j(F2), j(F2T),
        j(R3), j(W3m), j(b3full),
        j(Whbd), j(bhfull), j(cmask),
    ]
    geom = dict(N=N, H=H, W=W, oh3=oh3, ow3=ow3,
                out_rows=out_rows, out_cols=out_cols)
    return operands, geom


# ------------------------------ pallas_call ----------------------------------

def build_fused_call(geom):
    in_specs = ([pl.BlockSpec(memory_space=pltpu.MemorySpace.SMEM)]     # alphas
                + [pl.BlockSpec(memory_space=pltpu.MemorySpace.VMEM)] * 21)
    return pl.pallas_call(
        _pnet_fused_kernel,
        out_shape=jax.ShapeDtypeStruct((geom["out_rows"], geom["out_cols"]),
                                       jnp.float32),
        in_specs=in_specs,
        out_specs=pl.BlockSpec(memory_space=pltpu.MemorySpace.VMEM),
    )


def pnet_forward(x_nchw, operands, geom, fused):
    N, H, W = geom["N"], geom["H"], geom["W"]
    oh3, ow3 = geom["oh3"], geom["ow3"]
    # NCHW -> NHWC -> row-strip layout [N*H, W*C]
    x2d = jnp.transpose(x_nchw, (0, 2, 3, 1)).astype(jnp.float32)
    x2d = x2d.reshape(N * H, W * 3)
    slab = fused(operands[0], x2d, *operands[1:])          # [out_rows, out_cols]
    yh = slab[: N * oh3, : ow3 * 5].reshape(N, oh3, ow3, 5)
    cond = jnp.transpose(yh[..., 0:1], (0, 3, 1, 2))       # [N, 1, oh3, ow3]
    offset = jnp.transpose(yh[..., 1:5], (0, 3, 1, 2))     # [N, 4, oh3, ow3]
    return cond, offset


# --------------------------------- main --------------------------------------

if __name__ == "__main__":
    key = jax.random.PRNGKey(0)
    k_param, k_x = jax.random.split(key)

    N, H, W = 2, 16, 16                      # small shapes; PNet is fully conv
    params = init_params(k_param)
    operands, geom = build_pnet_operands(params, N, H, W)
    fused = build_fused_call(geom)

    x = jax.random.normal(k_x, (N, 3, H, W), dtype=jnp.float32)

    fwd = jax.jit(lambda xx: pnet_forward(xx, operands, geom, fused))
    cond, offset = fwd(x)
    jax.block_until_ready((cond, offset))

    assert cond.shape == (N, 1, geom["oh3"], geom["ow3"])
    assert offset.shape == (N, 4, geom["oh3"], geom["ow3"])
    assert bool(jnp.all(jnp.isfinite(cond))) and bool(jnp.all(jnp.isfinite(offset)))
    assert bool(jnp.all((cond >= 0.0) & (cond <= 1.0)))
    print("KERNEL_OK")
</pallas_src>

<mosaic_0001>
module attributes {stable_mosaic.version = 11 : i64} {
  func.func @_pnet_fused_kernel(%arg0: memref<3xf32, #tpu.memory_space<smem>>, %arg1: memref<32x48xf32, #tpu.memory_space<vmem>>, %arg2: memref<3x28x32xf32, #tpu.memory_space<vmem>>, %arg3: memref<3x48x84xf32, #tpu.memory_space<vmem>>, %arg4: memref<1x6xf32, #tpu.memory_space<vmem>>, %arg5: memref<1x6xf32, #tpu.memory_space<vmem>>, %arg6: memref<84x6xf32, #tpu.memory_space<vmem>>, %arg7: memref<6x84xf32, #tpu.memory_space<vmem>>, %arg8: memref<2x14x28xf32, #tpu.memory_space<vmem>>, %arg9: memref<2x84x42xf32, #tpu.memory_space<vmem>>, %arg10: memref<3x10x14xf32, #tpu.memory_space<vmem>>, %arg11: memref<3x42x80xf32, #tpu.memory_space<vmem>>, %arg12: memref<1x16xf32, #tpu.memory_space<vmem>>, %arg13: memref<1x16xf32, #tpu.memory_space<vmem>>, %arg14: memref<80x16xf32, #tpu.memory_space<vmem>>, %arg15: memref<16x80xf32, #tpu.memory_space<vmem>>, %arg16: memref<3x8x10xf32, #tpu.memory_space<vmem>>, %arg17: memref<3x80x192xf32, #tpu.memory_space<vmem>>, %arg18: memref<1x192xf32, #tpu.memory_space<vmem>>, %arg19: memref<192x128xf32, #tpu.memory_space<vmem>>, %arg20: memref<1x128xf32, #tpu.memory_space<vmem>>, %arg21: memref<1x128xf32, #tpu.memory_space<vmem>>, %arg22: memref<8x128xf32, #tpu.memory_space<vmem>>) attributes {dimension_semantics = [], scalar_prefetch = 0 : i64, scratch_operands = 0 : i64, tpu.core_type = #tpu.core_type<tc>} {
    %c0 = arith.constant 0 : index
    %0 = memref.load %arg0[%c0] : memref<3xf32, #tpu.memory_space<smem>>
    %c1 = arith.constant 1 : index
    %1 = memref.load %arg0[%c1] : memref<3xf32, #tpu.memory_space<smem>>
    %c2 = arith.constant 2 : index
    %2 = memref.load %arg0[%c2] : memref<3xf32, #tpu.memory_space<smem>>
    %c0_0 = arith.constant 0 : index
    %c0_1 = arith.constant 0 : index
    %3 = vector.load %arg1[%c0_0, %c0_1] : memref<32x48xf32, #tpu.memory_space<vmem>>, vector<32x48xf32>
    %c0_2 = arith.constant 0 : index
    %c0_3 = arith.constant 0 : index
    %c0_4 = arith.constant 0 : index
    %4 = vector.load %arg2[%c0_2, %c0_3, %c0_4] : memref<3x28x32xf32, #tpu.memory_space<vmem>>, vector<1x28x32xf32>
    %5 = vector.shape_cast %4 : vector<1x28x32xf32> to vector<28x32xf32>
    %cst = arith.constant dense<0.000000e+00> : vector<28x48xf32>
    %6 = tpu.matmul %5, %3, %cst {dimension_numbers = #tpu.dot_dimension_numbers<[1], [0], [0], [1], [0, 0, 1, 1], [], []>} : vector<28x32xf32>, vector<32x48xf32>, vector<28x48xf32> -> vector<28x48xf32>
    %c0_5 = arith.constant 0 : index
    %c0_6 = arith.constant 0 : index
    %c0_7 = arith.constant 0 : index
    %7 = vector.load %arg3[%c0_5, %c0_6, %c0_7] : memref<3x48x84xf32, #tpu.memory_space<vmem>>, vector<1x48x84xf32>
    %8 = vector.shape_cast %7 : vector<1x48x84xf32> to vector<48x84xf32>
    %cst_8 = arith.constant dense<0.000000e+00> : vector<28x84xf32>
    %9 = tpu.matmul %6, %8, %cst_8 {dimension_numbers = #tpu.dot_dimension_numbers<[1], [0], [0], [1], [0, 0, 1, 1], [], []>} : vector<28x48xf32>, vector<48x84xf32>, vector<28x84xf32> -> vector<28x84xf32>
    %c1_9 = arith.constant 1 : index
    %c0_10 = arith.constant 0 : index
    %c0_11 = arith.constant 0 : index
    %10 = vector.load %arg2[%c1_9, %c0_10, %c0_11] : memref<3x28x32xf32, #tpu.memory_space<vmem>>, vector<1x28x32xf32>
    %11 = vector.shape_cast %10 : vector<1x28x32xf32> to vector<28x32xf32>
    %cst_12 = arith.constant dense<0.000000e+00> : vector<28x48xf32>
    %12 = tpu.matmul %11, %3, %cst_12 {dimension_numbers = #tpu.dot_dimension_numbers<[1], [0], [0], [1], [0, 0, 1, 1], [], []>} : vector<28x32xf32>, vector<32x48xf32>, vector<28x48xf32> -> vector<28x48xf32>
    %c1_13 = arith.constant 1 : index
    %c0_14 = arith.constant 0 : index
    %c0_15 = arith.constant 0 : index
    %13 = vector.load %arg3[%c1_13, %c0_14, %c0_15] : memref<3x48x84xf32, #tpu.memory_space<vmem>>, vector<1x48x84xf32>
    %14 = vector.shape_cast %13 : vector<1x48x84xf32> to vector<48x84xf32>
    %cst_16 = arith.constant dense<0.000000e+00> : vector<28x84xf32>
    %15 = tpu.matmul %12, %14, %cst_16 {dimension_numbers = #tpu.dot_dimension_numbers<[1], [0], [0], [1], [0, 0, 1, 1], [], []>} : vector<28x48xf32>, vector<48x84xf32>, vector<28x84xf32> -> vector<28x84xf32>
    %16 = arith.addf %9, %15 : vector<28x84xf32>
    %c2_17 = arith.constant 2 : index
    %c0_18 = arith.constant 0 : index
    %c0_19 = arith.constant 0 : index
    %17 = vector.load %arg2[%c2_17, %c0_18, %c0_19] : memref<3x28x32xf32, #tpu.memory_space<vmem>>, vector<1x28x32xf32>
    %18 = vector.shape_cast %17 : vector<1x28x32xf32> to vector<28x32xf32>
    %cst_20 = arith.constant dense<0.000000e+00> : vector<28x48xf32>
    %19 = tpu.matmul %18, %3, %cst_20 {dimension_numbers = #tpu.dot_dimension_numbers<[1], [0], [0], [1], [0, 0, 1, 1], [], []>} : vector<28x32xf32>, vector<32x48xf32>, vector<28x48xf32> -> vector<28x48xf32>
    %c2_21 = arith.constant 2 : index
    %c0_22 = arith.constant 0 : index
    %c0_23 = arith.constant 0 : index
    %20 = vector.load %arg3[%c2_21, %c0_22, %c0_23] : memref<3x48x84xf32, #tpu.memory_space<vmem>>, vector<1x48x84xf32>
    %21 = vector.shape_cast %20 : vector<1x48x84xf32> to vector<48x84xf32>
    %cst_24 = arith.constant dense<0.000000e+00> : vector<28x84xf32>
    %22 = tpu.matmul %19, %21, %cst_24 {dimension_numbers = #tpu.dot_dimension_numbers<[1], [0], [0], [1], [0, 0, 1, 1], [], []>} : vector<28x48xf32>, vector<48x84xf32>, vector<28x84xf32> -> vector<28x84xf32>
    %23 = arith.addf %16, %22 : vector<28x84xf32>
    %c0_25 = arith.constant 0 : index
    %c0_26 = arith.constant 0 : index
    %24 = vector.load %arg4[%c0_25, %c0_26] : memref<1x6xf32, #tpu.memory_space<vmem>>, vector<1x6xf32>
    %c0_27 = arith.constant 0 : index
    %c0_28 = arith.constant 0 : index
    %25 = vector.load %arg5[%c0_27, %c0_28] : memref<1x6xf32, #tpu.memory_space<vmem>>, vector<1x6xf32>
    %c0_29 = arith.constant 0 : index
    %c0_30 = arith.constant 0 : index
    %26 = vector.load %arg6[%c0_29, %c0_30] : memref<84x6xf32, #tpu.memory_space<vmem>>, vector<84x6xf32>
    %c0_31 = arith.constant 0 : index
    %c0_32 = arith.constant 0 : index
    %27 = vector.load %arg7[%c0_31, %c0_32] : memref<6x84xf32, #tpu.memory_space<vmem>>, vector<6x84xf32>
    %cst_33 = arith.constant dense<0.000000e+00> : vector<84xf32>
    %28 = vector.multi_reduction <add>, %23, %cst_33 [0] : vector<28x84xf32> to vector<84xf32>
    %29 = vector.shape_cast %28 : vector<84xf32> to vector<1x84xf32>
    %cst_34 = arith.constant dense<0.000000e+00> : vector<1x6xf32>
    %30 = tpu.matmul %29, %26, %cst_34 {dimension_numbers = #tpu.dot_dimension_numbers<[1], [0], [0], [1], [0, 0, 1, 1], [], []>} : vector<1x84xf32>, vector<84x6xf32>, vector<1x6xf32> -> vector<1x6xf32>
    %31 = arith.mulf %23, %23 : vector<28x84xf32>
    %cst_35 = arith.constant dense<0.000000e+00> : vector<84xf32>
    %32 = vector.multi_reduction <add>, %31, %cst_35 [0] : vector<28x84xf32> to vector<84xf32>
    %33 = vector.shape_cast %32 : vector<84xf32> to vector<1x84xf32>
    %cst_36 = arith.constant dense<0.000000e+00> : vector<1x6xf32>
    %34 = tpu.matmul %33, %26, %cst_36 {dimension_numbers = #tpu.dot_dimension_numbers<[1], [0], [0], [1], [0, 0, 1, 1], [], []>} : vector<1x84xf32>, vector<84x6xf32>, vector<1x6xf32> -> vector<1x6xf32>
    %cst_37 = arith.constant 3.920000e+02 : f32
    %35 = vector.broadcast %cst_37 : f32 to vector<1x6xf32>
    %36 = arith.divf %30, %35 : vector<1x6xf32>
    %cst_38 = arith.constant 3.920000e+02 : f32
    %37 = vector.broadcast %cst_38 : f32 to vector<1x6xf32>
    %38 = arith.divf %34, %37 : vector<1x6xf32>
    %39 = arith.mulf %36, %36 : vector<1x6xf32>
    %40 = arith.subf %38, %39 : vector<1x6xf32>
    %cst_39 = arith.constant 9.99999974E-6 : f32
    %41 = vector.broadcast %cst_39 : f32 to vector<1x6xf32>
    %42 = arith.addf %40, %41 : vector<1x6xf32>
    %43 = math.rsqrt %42 : vector<1x6xf32>
    %44 = arith.mulf %24, %43 : vector<1x6xf32>
    %45 = arith.mulf %36, %44 : vector<1x6xf32>
    %46 = arith.subf %25, %45 : vector<1x6xf32>
    %cst_40 = arith.constant dense<0.000000e+00> : vector<1x84xf32>
    %47 = tpu.matmul %44, %27, %cst_40 {dimension_numbers = #tpu.dot_dimension_numbers<[1], [0], [0], [1], [0, 0, 1, 1], [], []>} : vector<1x6xf32>, vector<6x84xf32>, vector<1x84xf32> -> vector<1x84xf32>
    %48 = vector.broadcast %47 : vector<1x84xf32> to vector<28x84xf32>
    %49 = arith.mulf %23, %48 : vector<28x84xf32>
    %cst_41 = arith.constant dense<0.000000e+00> : vector<1x84xf32>
    %50 = tpu.matmul %46, %27, %cst_41 {dimension_numbers = #tpu.dot_dimension_numbers<[1], [0], [0], [1], [0, 0, 1, 1], [], []>} : vector<1x6xf32>, vector<6x84xf32>, vector<1x84xf32> -> vector<1x84xf32>
    %51 = vector.broadcast %50 : vector<1x84xf32> to vector<28x84xf32>
    %52 = arith.addf %49, %51 : vector<28x84xf32>
    %cst_42 = arith.constant 0.000000e+00 : f32
    %53 = vector.broadcast %cst_42 : f32 to vector<28x84xf32>
    %54 = arith.cmpf oge, %52, %53 : vector<28x84xf32>
    %55 = vector.broadcast %0 : f32 to vector<28x84xf32>
    %56 = arith.mulf %55, %52 : vector<28x84xf32>
    %57 = arith.select %54, %52, %56 : vector<28x84xi1>, vector<28x84xf32>
    %c0_43 = arith.constant 0 : index
    %c0_44 = arith.constant 0 : index
    %c0_45 = arith.constant 0 : index
    %58 = vector.load %arg9[%c0_43, %c0_44, %c0_45] : memref<2x84x42xf32, #tpu.memory_space<vmem>>, vector<1x84x42xf32>
    %59 = vector.shape_cast %58 : vector<1x84x42xf32> to vector<84x42xf32>
    %cst_46 = arith.constant dense<0.000000e+00> : vector<28x42xf32>
    %60 = tpu.matmul %57, %59, %cst_46 {dimension_numbers = #tpu.dot_dimension_numbers<[1], [0], [0], [1], [0, 0, 1, 1], [], []>} : vector<28x84xf32>, vector<84x42xf32>, vector<28x42xf32> -> vector<28x42xf32>
    %c1_47 = arith.constant 1 : index
    %c0_48 = arith.constant 0 : index
    %c0_49 = arith.constant 0 : index
    %61 = vector.load %arg9[%c1_47, %c0_48, %c0_49] : memref<2x84x42xf32, #tpu.memory_space<vmem>>, vector<1x84x42xf32>
    %62 = vector.shape_cast %61 : vector<1x84x42xf32> to vector<84x42xf32>
    %cst_50 = arith.constant dense<0.000000e+00> : vector<28x42xf32>
    %63 = tpu.matmul %57, %62, %cst_50 {dimension_numbers = #tpu.dot_dimension_numbers<[1], [0], [0], [1], [0, 0, 1, 1], [], []>} : vector<28x84xf32>, vector<84x42xf32>, vector<28x42xf32> -> vector<28x42xf32>
    %c0_51 = arith.constant 0 : index
    %c0_52 = arith.constant 0 : index
    %c0_53 = arith.constant 0 : index
    %64 = vector.load %arg8[%c0_51, %c0_52, %c0_53] : memref<2x14x28xf32, #tpu.memory_space<vmem>>, vector<1x14x28xf32>
    %65 = vector.shape_cast %64 : vector<1x14x28xf32> to vector<14x28xf32>
    %cst_54 = arith.constant dense<0.000000e+00> : vector<14x42xf32>
    %66 = tpu.matmul %65, %60, %cst_54 {dimension_numbers = #tpu.dot_dimension_numbers<[1], [0], [0], [1], [0, 0, 1, 1], [], []>} : vector<14x28xf32>, vector<28x42xf32>, vector<14x42xf32> -> vector<14x42xf32>
    %c0_55 = arith.constant 0 : index
    %c0_56 = arith.constant 0 : index
    %c0_57 = arith.constant 0 : index
    %67 = vector.load %arg8[%c0_55, %c0_56, %c0_57] : memref<2x14x28xf32, #tpu.memory_space<vmem>>, vector<1x14x28xf32>
    %68 = vector.shape_cast %67 : vector<1x14x28xf32> to vector<14x28xf32>
    %cst_58 = arith.constant dense<0.000000e+00> : vector<14x42xf32>
    %69 = tpu.matmul %68, %63, %cst_58 {dimension_numbers = #tpu.dot_dimension_numbers<[1], [0], [0], [1], [0, 0, 1, 1], [], []>} : vector<14x28xf32>, vector<28x42xf32>, vector<14x42xf32> -> vector<14x42xf32>
    %70 = arith.maximumf %66, %69 : vector<14x42xf32>
    %c1_59 = arith.constant 1 : index
    %c0_60 = arith.constant 0 : index
    %c0_61 = arith.constant 0 : index
    %71 = vector.load %arg8[%c1_59, %c0_60, %c0_61] : memref<2x14x28xf32, #tpu.memory_space<vmem>>, vector<1x14x28xf32>
    %72 = vector.shape_cast %71 : vector<1x14x28xf32> to vector<14x28xf32>
    %cst_62 = arith.constant dense<0.000000e+00> : vector<14x42xf32>
    %73 = tpu.matmul %72, %60, %cst_62 {dimension_numbers = #tpu.dot_dimension_numbers<[1], [0], [0], [1], [0, 0, 1, 1], [], []>} : vector<14x28xf32>, vector<28x42xf32>, vector<14x42xf32> -> vector<14x42xf32>
    %c1_63 = arith.constant 1 : index
    %c0_64 = arith.constant 0 : index
    %c0_65 = arith.constant 0 : index
    %74 = vector.load %arg8[%c1_63, %c0_64, %c0_65] : memref<2x14x28xf32, #tpu.memory_space<vmem>>, vector<1x14x28xf32>
    %75 = vector.shape_cast %74 : vector<1x14x28xf32> to vector<14x28xf32>
    %cst_66 = arith.constant dense<0.000000e+00> : vector<14x42xf32>
    %76 = tpu.matmul %75, %63, %cst_66 {dimension_numbers = #tpu.dot_dimension_numbers<[1], [0], [0], [1], [0, 0, 1, 1], [], []>} : vector<14x28xf32>, vector<28x42xf32>, vector<14x42xf32> -> vector<14x42xf32>
    %77 = arith.maximumf %73, %76 : vector<14x42xf32>
    %78 = arith.maximumf %70, %77 : vector<14x42xf32>
    %c0_67 = arith.constant 0 : index
    %c0_68 = arith.constant 0 : index
    %c0_69 = arith.constant 0 : index
    %79 = vector.load %arg10[%c0_67, %c0_68, %c0_69] : memref<3x10x14xf32, #tpu.memory_space<vmem>>, vector<1x10x14xf32>
    %80 = vector.shape_cast %79 : vector<1x10x14xf32> to vector<10x14xf32>
    %cst_70 = arith.constant dense<0.000000e+00> : vector<10x42xf32>
    %81 = tpu.matmul %80, %78, %cst_70 {dimension_numbers = #tpu.dot_dimension_numbers<[1], [0], [0], [1], [0, 0, 1, 1], [], []>} : vector<10x14xf32>, vector<14x42xf32>, vector<10x42xf32> -> vector<10x42xf32>
    %c0_71 = arith.constant 0 : index
    %c0_72 = arith.constant 0 : index
    %c0_73 = arith.constant 0 : index
    %82 = vector.load %arg11[%c0_71, %c0_72, %c0_73] : memref<3x42x80xf32, #tpu.memory_space<vmem>>, vector<1x42x80xf32>
    %83 = vector.shape_cast %82 : vector<1x42x80xf32> to vector<42x80xf32>
    %cst_74 = arith.constant dense<0.000000e+00> : vector<10x80xf32>
    %84 = tpu.matmul %81, %83, %cst_74 {dimension_numbers = #tpu.dot_dimension_numbers<[1], [0], [0], [1], [0, 0, 1, 1], [], []>} : vector<10x42xf32>, vector<42x80xf32>, vector<10x80xf32> -> vector<10x80xf32>
    %c1_75 = arith.constant 1 : index
    %c0_76 = arith.constant 0 : index
    %c0_77 = arith.constant 0 : index
    %85 = vector.load %arg10[%c1_75, %c0_76, %c0_77] : memref<3x10x14xf32, #tpu.memory_space<vmem>>, vector<1x10x14xf32>
    %86 = vector.shape_cast %85 : vector<1x10x14xf32> to vector<10x14xf32>
    %cst_78 = arith.constant dense<0.000000e+00> : vector<10x42xf32>
    %87 = tpu.matmul %86, %78, %cst_78 {dimension_numbers = #tpu.dot_dimension_numbers<[1], [0], [0], [1], [0, 0, 1, 1], [], []>} : vector<10x14xf32>, vector<14x42xf32>, vector<10x42xf32> -> vector<10x42xf32>
    %c1_79 = arith.constant 1 : index
    %c0_80 = arith.constant 0 : index
    %c0_81 = arith.constant 0 : index
    %88 = vector.load %arg11[%c1_79, %c0_80, %c0_81] : memref<3x42x80xf32, #tpu.memory_space<vmem>>, vector<1x42x80xf32>
    %89 = vector.shape_cast %88 : vector<1x42x80xf32> to vector<42x80xf32>
    %cst_82 = arith.constant dense<0.000000e+00> : vector<10x80xf32>
    %90 = tpu.matmul %87, %89, %cst_82 {dimension_numbers = #tpu.dot_dimension_numbers<[1], [0], [0], [1], [0, 0, 1, 1], [], []>} : vector<10x42xf32>, vector<42x80xf32>, vector<10x80xf32> -> vector<10x80xf32>
    %91 = arith.addf %84, %90 : vector<10x80xf32>
    %c2_83 = arith.constant 2 : index
    %c0_84 = arith.constant 0 : index
    %c0_85 = arith.constant 0 : index
    %92 = vector.load %arg10[%c2_83, %c0_84, %c0_85] : memref<3x10x14xf32, #tpu.memory_space<vmem>>, vector<1x10x14xf32>
    %93 = vector.shape_cast %92 : vector<1x10x14xf32> to vector<10x14xf32>
    %cst_86 = arith.constant dense<0.000000e+00> : vector<10x42xf32>
    %94 = tpu.matmul %93, %78, %cst_86 {dimension_numbers = #tpu.dot_dimension_numbers<[1], [0], [0], [1], [0, 0, 1, 1], [], []>} : vector<10x14xf32>, vector<14x42xf32>, vector<10x42xf32> -> vector<10x42xf32>
    %c2_87 = arith.constant 2 : index
    %c0_88 = arith.constant 0 : index
    %c0_89 = arith.constant 0 : index
    %95 = vector.load %arg11[%c2_87, %c0_88, %c0_89] : memref<3x42x80xf32, #tpu.memory_space<vmem>>, vector<1x42x80xf32>
    %96 = vector.shape_cast %95 : vector<1x42x80xf32> to vector<42x80xf32>
    %cst_90 = arith.constant dense<0.000000e+00> : vector<10x80xf32>
    %97 = tpu.matmul %94, %96, %cst_90 {dimension_numbers = #tpu.dot_dimension_numbers<[1], [0], [0], [1], [0, 0, 1, 1], [], []>} : vector<10x42xf32>, vector<42x80xf32>, vector<10x80xf32> -> vector<10x80xf32>
    %98 = arith.addf %91, %97 : vector<10x80xf32>
    %c0_91 = arith.constant 0 : index
    %c0_92 = arith.constant 0 : index
    %99 = vector.load %arg12[%c0_91, %c0_92] : memref<1x16xf32, #tpu.memory_space<vmem>>, vector<1x16xf32>
    %c0_93 = arith.constant 0 : index
    %c0_94 = arith.constant 0 : index
    %100 = vector.load %arg13[%c0_93, %c0_94] : memref<1x16xf32, #tpu.memory_space<vmem>>, vector<1x16xf32>
    %c0_95 = arith.constant 0 : index
    %c0_96 = arith.constant 0 : index
    %101 = vector.load %arg14[%c0_95, %c0_96] : memref<80x16xf32, #tpu.memory_space<vmem>>, vector<80x16xf32>
    %c0_97 = arith.constant 0 : index
    %c0_98 = arith.constant 0 : index
    %102 = vector.load %arg15[%c0_97, %c0_98] : memref<16x80xf32, #tpu.memory_space<vmem>>, vector<16x80xf32>
    %cst_99 = arith.constant dense<0.000000e+00> : vector<80xf32>
    %103 = vector.multi_reduction <add>, %98, %cst_99 [0] : vector<10x80xf32> to vector<80xf32>
    %104 = vector.shape_cast %103 : vector<80xf32> to vector<1x80xf32>
    %cst_100 = arith.constant dense<0.000000e+00> : vector<1x16xf32>
    %105 = tpu.matmul %104, %101, %cst_100 {dimension_numbers = #tpu.dot_dimension_numbers<[1], [0], [0], [1], [0, 0, 1, 1], [], []>} : vector<1x80xf32>, vector<80x16xf32>, vector<1x16xf32> -> vector<1x16xf32>
    %106 = arith.mulf %98, %98 : vector<10x80xf32>
    %cst_101 = arith.constant dense<0.000000e+00> : vector<80xf32>
    %107 = vector.multi_reduction <add>, %106, %cst_101 [0] : vector<10x80xf32> to vector<80xf32>
    %108 = vector.shape_cast %107 : vector<80xf32> to vector<1x80xf32>
    %cst_102 = arith.constant dense<0.000000e+00> : vector<1x16xf32>
    %109 = tpu.matmul %108, %101, %cst_102 {dimension_numbers = #tpu.dot_dimension_numbers<[1], [0], [0], [1], [0, 0, 1, 1], [], []>} : vector<1x80xf32>, vector<80x16xf32>, vector<1x16xf32> -> vector<1x16xf32>
    %cst_103 = arith.constant 5.000000e+01 : f32
    %110 = vector.broadcast %cst_103 : f32 to vector<1x16xf32>
    %111 = arith.divf %105, %110 : vector<1x16xf32>
    %cst_104 = arith.constant 5.000000e+01 : f32
    %112 = vector.broadcast %cst_104 : f32 to vector<1x16xf32>
    %113 = arith.divf %109, %112 : vector<1x16xf32>
    %114 = arith.mulf %111, %111 : vector<1x16xf32>
    %115 = arith.subf %113, %114 : vector<1x16xf32>
    %cst_105 = arith.constant 9.99999974E-6 : f32
    %116 = vector.broadcast %cst_105 : f32 to vector<1x16xf32>
    %117 = arith.addf %115, %116 : vector<1x16xf32>
    %118 = math.rsqrt %117 : vector<1x16xf32>
    %119 = arith.mulf %99, %118 : vector<1x16xf32>
    %120 = arith.mulf %111, %119 : vector<1x16xf32>
    %121 = arith.subf %100, %120 : vector<1x16xf32>
    %cst_106 = arith.constant dense<0.000000e+00> : vector<1x80xf32>
    %122 = tpu.matmul %119, %102, %cst_106 {dimension_numbers = #tpu.dot_dimension_numbers<[1], [0], [0], [1], [0, 0, 1, 1], [], []>} : vector<1x16xf32>, vector<16x80xf32>, vector<1x80xf32> -> vector<1x80xf32>
    %123 = vector.broadcast %122 : vector<1x80xf32> to vector<10x80xf32>
    %124 = arith.mulf %98, %123 : vector<10x80xf32>
    %cst_107 = arith.constant dense<0.000000e+00> : vector<1x80xf32>
    %125 = tpu.matmul %121, %102, %cst_107 {dimension_numbers = #tpu.dot_dimension_numbers<[1], [0], [0], [1], [0, 0, 1, 1], [], []>} : vector<1x16xf32>, vector<16x80xf32>, vector<1x80xf32> -> vector<1x80xf32>
    %126 = vector.broadcast %125 : vector<1x80xf32> to vector<10x80xf32>
    %127 = arith.addf %124, %126 : vector<10x80xf32>
    %cst_108 = arith.constant 0.000000e+00 : f32
    %128 = vector.broadcast %cst_108 : f32 to vector<10x80xf32>
    %129 = arith.cmpf oge, %127, %128 : vector<10x80xf32>
    %130 = vector.broadcast %1 : f32 to vector<10x80xf32>
    %131 = arith.mulf %130, %127 : vector<10x80xf32>
    %132 = arith.select %129, %127, %131 : vector<10x80xi1>, vector<10x80xf32>
    %c0_109 = arith.constant 0 : index
    %c0_110 = arith.constant 0 : index
    %c0_111 = arith.constant 0 : index
    %133 = vector.load %arg16[%c0_109, %c0_110, %c0_111] : memref<3x8x10xf32, #tpu.memory_space<vmem>>, vector<1x8x10xf32>
    %134 = vector.shape_cast %133 : vector<1x8x10xf32> to vector<8x10xf32>
    %cst_112 = arith.constant dense<0.000000e+00> : vector<8x80xf32>
    %135 = tpu.matmul %134, %132, %cst_112 {dimension_numbers = #tpu.dot_dimension_numbers<[1], [0], [0], [1], [0, 0, 1, 1], [], []>} : vector<8x10xf32>, vector<10x80xf32>, vector<8x80xf32> -> vector<8x80xf32>
    %c0_113 = arith.constant 0 : index
    %c0_114 = arith.constant 0 : index
    %c0_115 = arith.constant 0 : index
    %136 = vector.load %arg17[%c0_113, %c0_114, %c0_115] : memref<3x80x192xf32, #tpu.memory_space<vmem>>, vector<1x80x192xf32>
    %137 = vector.shape_cast %136 : vector<1x80x192xf32> to vector<80x192xf32>
    %cst_116 = arith.constant dense<0.000000e+00> : vector<8x192xf32>
    %138 = tpu.matmul %135, %137, %cst_116 {dimension_numbers = #tpu.dot_dimension_numbers<[1], [0], [0], [1], [0, 0, 1, 1], [], []>} : vector<8x80xf32>, vector<80x192xf32>, vector<8x192xf32> -> vector<8x192xf32>
    %c1_117 = arith.constant 1 : index
    %c0_118 = arith.constant 0 : index
    %c0_119 = arith.constant 0 : index
    %139 = vector.load %arg16[%c1_117, %c0_118, %c0_119] : memref<3x8x10xf32, #tpu.memory_space<vmem>>, vector<1x8x10xf32>
    %140 = vector.shape_cast %139 : vector<1x8x10xf32> to vector<8x10xf32>
    %cst_120 = arith.constant dense<0.000000e+00> : vector<8x80xf32>
    %141 = tpu.matmul %140, %132, %cst_120 {dimension_numbers = #tpu.dot_dimension_numbers<[1], [0], [0], [1], [0, 0, 1, 1], [], []>} : vector<8x10xf32>, vector<10x80xf32>, vector<8x80xf32> -> vector<8x80xf32>
    %c1_121 = arith.constant 1 : index
    %c0_122 = arith.constant 0 : index
    %c0_123 = arith.constant 0 : index
    %142 = vector.load %arg17[%c1_121, %c0_122, %c0_123] : memref<3x80x192xf32, #tpu.memory_space<vmem>>, vector<1x80x192xf32>
    %143 = vector.shape_cast %142 : vector<1x80x192xf32> to vector<80x192xf32>
    %cst_124 = arith.constant dense<0.000000e+00> : vector<8x192xf32>
    %144 = tpu.matmul %141, %143, %cst_124 {dimension_numbers = #tpu.dot_dimension_numbers<[1], [0], [0], [1], [0, 0, 1, 1], [], []>} : vector<8x80xf32>, vector<80x192xf32>, vector<8x192xf32> -> vector<8x192xf32>
    %145 = arith.addf %138, %144 : vector<8x192xf32>
    %c2_125 = arith.constant 2 : index
    %c0_126 = arith.constant 0 : index
    %c0_127 = arith.constant 0 : index
    %146 = vector.load %arg16[%c2_125, %c0_126, %c0_127] : memref<3x8x10xf32, #tpu.memory_space<vmem>>, vector<1x8x10xf32>
    %147 = vector.shape_cast %146 : vector<1x8x10xf32> to vector<8x10xf32>
    %cst_128 = arith.constant dense<0.000000e+00> : vector<8x80xf32>
    %148 = tpu.matmul %147, %132, %cst_128 {dimension_numbers = #tpu.dot_dimension_numbers<[1], [0], [0], [1], [0, 0, 1, 1], [], []>} : vector<8x10xf32>, vector<10x80xf32>, vector<8x80xf32> -> vector<8x80xf32>
    %c2_129 = arith.constant 2 : index
    %c0_130 = arith.constant 0 : index
    %c0_131 = arith.constant 0 : index
    %149 = vector.load %arg17[%c2_129, %c0_130, %c0_131] : memref<3x80x192xf32, #tpu.memory_space<vmem>>, vector<1x80x192xf32>
    %150 = vector.shape_cast %149 : vector<1x80x192xf32> to vector<80x192xf32>
    %cst_132 = arith.constant dense<0.000000e+00> : vector<8x192xf32>
    %151 = tpu.matmul %148, %150, %cst_132 {dimension_numbers = #tpu.dot_dimension_numbers<[1], [0], [0], [1], [0, 0, 1, 1], [], []>} : vector<8x80xf32>, vector<80x192xf32>, vector<8x192xf32> -> vector<8x192xf32>
    %152 = arith.addf %145, %151 : vector<8x192xf32>
    %c0_133 = arith.constant 0 : index
    %c0_134 = arith.constant 0 : index
    %153 = vector.load %arg18[%c0_133, %c0_134] : memref<1x192xf32, #tpu.memory_space<vmem>>, vector<1x192xf32>
    %154 = vector.broadcast %153 : vector<1x192xf32> to vector<8x192xf32>
    %155 = arith.addf %152, %154 : vector<8x192xf32>
    %cst_135 = arith.constant 0.000000e+00 : f32
    %156 = vector.broadcast %cst_135 : f32 to vector<8x192xf32>
    %157 = arith.cmpf oge, %155, %156 : vector<8x192xf32>
    %158 = vector.broadcast %2 : f32 to vector<8x192xf32>
    %159 = arith.mulf %158, %155 : vector<8x192xf32>
    %160 = arith.select %157, %155, %159 : vector<8x192xi1>, vector<8x192xf32>
    %c0_136 = arith.constant 0 : index
    %c0_137 = arith.constant 0 : index
    %161 = vector.load %arg19[%c0_136, %c0_137] : memref<192x128xf32, #tpu.memory_space<vmem>>, vector<192x128xf32>
    %cst_138 = arith.constant dense<0.000000e+00> : vector<8x128xf32>
    %162 = tpu.matmul %160, %161, %cst_138 {dimension_numbers = #tpu.dot_dimension_numbers<[1], [0], [0], [1], [0, 0, 1, 1], [], []>} : vector<8x192xf32>, vector<192x128xf32>, vector<8x128xf32> -> vector<8x128xf32>
    %c0_139 = arith.constant 0 : index
    %c0_140 = arith.constant 0 : index
    %163 = vector.load %arg20[%c0_139, %c0_140] : memref<1x128xf32, #tpu.memory_space<vmem>>, vector<1x128xf32>
    %164 = vector.broadcast %163 : vector<1x128xf32> to vector<8x128xf32>
    %165 = arith.addf %162, %164 : vector<8x128xf32>
    %c0_141 = arith.constant 0 : index
    %c0_142 = arith.constant 0 : index
    %166 = vector.load %arg21[%c0_141, %c0_142] : memref<1x128xf32, #tpu.memory_space<vmem>>, vector<1x128xf32>
    %cst_143 = arith.constant 5.000000e-01 : f32
    %167 = vector.broadcast %cst_143 : f32 to vector<1x128xf32>
    %168 = arith.cmpf ogt, %166, %167 : vector<1x128xf32>
    %169 = arith.negf %165 : vector<8x128xf32>
    %170 = math.exp %169 : vector<8x128xf32>
    %cst_144 = arith.constant 1.000000e+00 : f32
    %171 = vector.broadcast %cst_144 : f32 to vector<8x128xf32>
    %172 = arith.addf %171, %170 : vector<8x128xf32>
    %173 = arith.divf %171, %172 : vector<8x128xf32>
    %174 = vector.shape_cast %168 : vector<1x128xi1> to vector<1x128xi1>
    %175 = vector.broadcast %174 : vector<1x128xi1> to vector<8x128xi1>
    %176 = arith.select %175, %173, %165 : vector<8x128xi1>, vector<8x128xf32>
    %c0_145 = arith.constant 0 : index
    %c0_146 = arith.constant 0 : index
    %177 = vector.load %arg22[%c0_145, %c0_146] : memref<8x128xf32, #tpu.memory_space<vmem>>, vector<8x128xf32>
    tpu.vector_store %arg22[%c0_145, %c0_146], %176 {strides = array<i32>} : memref<8x128xf32, #tpu.memory_space<vmem>>, vector<8x128xf32>,
    return
  }
}

</mosaic_0001>

<llo_original>
// kernel: _lambda_.1
$region0: #{_lambda_.1}
  #allocation0 [shape = 'u32[]', space=smem, size = 0x4, offset = 0x4, fixed_abs, tag = 'smem constant byte address 0x4 - core index']
  #allocation1 [shape = 'u32[72,128]{1,0:T(1,128)}', space=vmem, size = 0x9000, scoped, tag = 'internal scratch']
  %s0 = inlined_call_operand.vmem [shape: f32[3], index: 0, kind: input, shape index: {}]
  %s1 = inlined_call_operand.vmem [shape: f32[32,48], index: 1, kind: input, shape index: {}]
  %s2 = inlined_call_operand.hbm [shape: f32[3,28,32], index: 2, kind: input, shape index: {}]
  %s3 = inlined_call_operand.hbm [shape: f32[3,48,84], index: 3, kind: input, shape index: {}]
  %s4 = inlined_call_operand.vmem [shape: f32[1,6], index: 4, kind: input, shape index: {}]
  %s5 = inlined_call_operand.vmem [shape: f32[1,6], index: 5, kind: input, shape index: {}]
  %s6 = inlined_call_operand.hbm [shape: f32[84,6], index: 6, kind: input, shape index: {}]
  %s7 = inlined_call_operand.vmem [shape: f32[6,84], index: 7, kind: input, shape index: {}]
  %s8 = inlined_call_operand.hbm [shape: f32[2,14,28], index: 8, kind: input, shape index: {}]
  %s9 = inlined_call_operand.vmem [shape: f32[2,84,42], index: 9, kind: input, shape index: {}]
  %s10 = inlined_call_operand.vmem [shape: f32[3,10,14], index: 10, kind: input, shape index: {}]
  %s11 = inlined_call_operand.hbm [shape: f32[3,42,80], index: 11, kind: input, shape index: {}]
  %s12 = inlined_call_operand.vmem [shape: f32[1,16], index: 12, kind: input, shape index: {}]
  %s13 = inlined_call_operand.vmem [shape: f32[1,16], index: 13, kind: input, shape index: {}]
  %s14 = inlined_call_operand.hbm [shape: f32[80,16], index: 14, kind: input, shape index: {}]
  %s15 = inlined_call_operand.hbm [shape: f32[16,80], index: 15, kind: input, shape index: {}]
  %s16 = inlined_call_operand.hbm [shape: f32[3,8,10], index: 16, kind: input, shape index: {}]
  %s17 = inlined_call_operand.hbm [shape: f32[3,80,192], index: 17, kind: input, shape index: {}]
  %s18 = inlined_call_operand.vmem [shape: f32[1,192], index: 18, kind: input, shape index: {}]
  %s19 = inlined_call_operand.vmem [shape: f32[192,128], index: 19, kind: input, shape index: {}]
  %s20 = inlined_call_operand.vmem [shape: f32[1,128], index: 20, kind: input, shape index: {}]
  %s21 = inlined_call_operand.hbm [shape: f32[1,128], index: 21, kind: input, shape index: {}]
  %s22 = inlined_call_operand.vmem [shape: f32[8,128], index: 22, kind: output, shape index: {}]
  %s23 = sld [smem:[#allocation0]]
  $region142: #{_lambda_.1} parent=0
    _
  %s25 = ssub.s32 1, %s23
  %s26 = scalar_select 0, %s25, %s23
  $region1: #{_lambda_.1} parent=0
    #allocation2 [shape = 'u8[512]{0}', space=smem, size = 0x200, scoped, tag = 'input window, operand 0, single buffered']
    #allocation3 [shape = 's32[1]{0}', space=sflag, size = 0x4, scoped, tag = 'scoped memory for _lambda_.1']
    #allocation4 [shape = 's32[1]{0}', space=sflag, size = 0x4, scoped, tag = 'scoped memory for _lambda_.1']
    #allocation5 [shape = 'u8[49152]{0}', space=vmem, size = 0xc000, scoped, tag = 'input window, operand 2, single buffered']
    #allocation6 [shape = 'u8[73728]{0}', space=vmem, size = 0x12000, scoped, tag = 'input window, operand 3, single buffered']
    #allocation7 [shape = 's32[1]{0}', space=sflag, size = 0x4, scoped, tag = 'scoped memory for _lambda_.1']
    #allocation8 [shape = 'u8[45056]{0}', space=vmem, size = 0xb000, scoped, tag = 'input window, operand 6, single buffered']
    #allocation9 [shape = 'u8[16384]{0}', space=vmem, size = 0x4000, scoped, tag = 'input window, operand 8, single buffered']
    #allocation10 [shape = 's32[1]{0}', space=sflag, size = 0x4, scoped, tag = 'scoped memory for _lambda_.1']
    #allocation11 [shape = 'u8[73728]{0}', space=vmem, size = 0x12000, scoped, tag = 'input window, operand 11, single buffered']
    #allocation12 [shape = 'u8[40960]{0}', space=vmem, size = 0xa000, scoped, tag = 'input window, operand 14, single buffered']
    #allocation13 [shape = 's32[1]{0}', space=sflag, size = 0x4, scoped, tag = 'scoped memory for _lambda_.1']
    #allocation14 [shape = 'u8[8192]{0}', space=vmem, size = 0x2000, scoped, tag = 'input window, operand 15, single buffered']
    #allocation15 [shape = 'u8[12288]{0}', space=vmem, size = 0x3000, scoped, tag = 'input window, operand 16, single buffered']
    #allocation16 [shape = 's32[1]{0}', space=sflag, size = 0x4, scoped, tag = 'scoped memory for _lambda_.1']
    #allocation17 [shape = 'u8[245760]{0}', space=vmem, size = 0x3c000, scoped, tag = 'input window, operand 17, single buffered']
    #allocation18 [shape = 'u8[512]{0}', space=vmem, size = 0x400, scoped, tag = 'input window, operand 21, single buffered']
    #allocation19 [shape = 's32[1]{0}', space=sflag, size = 0x4, scoped, tag = 'scoped memory for _lambda_.1']
    %27 = vsyncpa [#allocation4], 0
    %28 = vsyncpa [#allocation3], 0
    %29 = vsyncpa [#allocation7], 0
    %30 = vsyncpa [#allocation10], 0
    %31 = vsyncpa [#allocation13], 0
    %32 = vsyncpa [#allocation16], 0
    %33 = vsyncpa [#allocation19], 0
    // Predicated region
    $region2: #{_lambda_.1} parent=1 // pred_check
      _
    $region3: #{_lambda_.1} parent=1 // pred_check_branch
      %35 = sbr.rel (0) target = $region5
    $region4: #{_lambda_.1} parent=1 // pred_region
      %37 = vsyncadd [#allocation4], 0
      %s39 = sshll.u32 %s0, 4
      %s40 = int_to_ptr.vmem [resolvable:$true] %s39
      %42 = dma.vmem_to_smem %s40, 16, [#allocation2], [#allocation4]
    $region5: #{_lambda_.1} parent=1 // pred_fallthru
      _
    // Predicated region
    $region6: #{_lambda_.1} parent=1 // pred_check
      _
    $region7: #{_lambda_.1} parent=1 // pred_check_branch
      %44 = sbr.rel (0) target = $region9
    $region8: #{_lambda_.1} parent=1 // pred_region
      _
    $region9: #{_lambda_.1} parent=1 // pred_fallthru
      _
    // Predicated region
    $region10: #{_lambda_.1} parent=1 // pred_check
      _
    $region11: #{_lambda_.1} parent=1 // pred_check_branch
      %46 = sbr.rel (0) target = $region13
    $region12: #{_lambda_.1} parent=1 // pred_region
      %48 = vsyncadd [#allocation3], 0
      %s49 = sshll.u32 %s2, 4
      %s50 = int_to_ptr.hbm [resolvable:$true] %s49
      %s51 = sshll.u32 [#allocation5], 4
      %s52 = int_to_ptr.vmem [resolvable:$true] %s51
      %57 = dma.hbm_to_vmem [thread:$0]  %s50, 1536, %s52, [#allocation3], 128, 128, 8
    $region13: #{_lambda_.1} parent=1 // pred_fallthru
      _
    // Predicated region
    $region14: #{_lambda_.1} parent=1 // pred_check
      _
    $region15: #{_lambda_.1} parent=1 // pred_check_branch
      %59 = sbr.rel (0) target = $region17
    $region16: #{_lambda_.1} parent=1 // pred_region
      %61 = vsyncadd [#allocation7], 0
      %s62 = sshll.u32 %s3, 4
      %s63 = int_to_ptr.hbm [resolvable:$true] %s62
      %s64 = sshll.u32 [#allocation6], 4
      %s65 = int_to_ptr.vmem [resolvable:$true] %s64
      %70 = dma.hbm_to_vmem [thread:$0]  %s63, 2304, %s65, [#allocation7], 128, 128, 8
    $region17: #{_lambda_.1} parent=1 // pred_fallthru
      _
    // Predicated region
    $region18: #{_lambda_.1} parent=1 // pred_check
      _
    $region19: #{_lambda_.1} parent=1 // pred_check_branch
      %72 = sbr.rel (0) target = $region21
    $region20: #{_lambda_.1} parent=1 // pred_region
      _
    $region21: #{_lambda_.1} parent=1 // pred_fallthru
      _
    // Predicated region
    $region22: #{_lambda_.1} parent=1 // pred_check
      _
    $region23: #{_lambda_.1} parent=1 // pred_check_branch
      %74 = sbr.rel (0) target = $region25
    $region24: #{_lambda_.1} parent=1 // pred_region
      _
    $region25: #{_lambda_.1} parent=1 // pred_fallthru
      _
    // Predicated region
    $region26: #{_lambda_.1} parent=1 // pred_check
      _
    $region27: #{_lambda_.1} parent=1 // pred_check_branch
      %76 = sbr.rel (0) target = $region29
    $region28: #{_lambda_.1} parent=1 // pred_region
      %78 = vsyncadd [#allocation7], 0
      %s79 = sshll.u32 %s6, 4
      %s80 = int_to_ptr.hbm [resolvable:$true] %s79
      %s81 = sshll.u32 [#allocation8], 4
      %s82 = int_to_ptr.vmem [resolvable:$true] %s81
      %87 = dma.hbm_to_vmem [thread:$0]  %s80, 1408, %s82, [#allocation7], 128, 128, 8
    $region29: #{_lambda_.1} parent=1 // pred_fallthru
      _
    // Predicated region
    $region30: #{_lambda_.1} parent=1 // pred_check
      _
    $region31: #{_lambda_.1} parent=1 // pred_check_branch
      %89 = sbr.rel (0) target = $region33
    $region32: #{_lambda_.1} parent=1 // pred_region
      _
    $region33: #{_lambda_.1} parent=1 // pred_fallthru
      _
    // Predicated region
    $region34: #{_lambda_.1} parent=1 // pred_check
      _
    $region35: #{_lambda_.1} parent=1 // pred_check_branch
      %91 = sbr.rel (0) target = $region37
    $region36: #{_lambda_.1} parent=1 // pred_region
      %93 = vsyncadd [#allocation10], 0
      %s94 = sshll.u32 %s8, 4
      %s95 = int_to_ptr.hbm [resolvable:$true] %s94
      %s96 = sshll.u32 [#allocation9], 4
      %s97 = int_to_ptr.vmem [resolvable:$true] %s96
      %102 = dma.hbm_to_vmem [thread:$0]  %s95, 512, %s97, [#allocation10], 128, 128, 8
    $region37: #{_lambda_.1} parent=1 // pred_fallthru
      _
    // Predicated region
    $region38: #{_lambda_.1} parent=1 // pred_check
      _
    $region39: #{_lambda_.1} parent=1 // pred_check_branch
      %104 = sbr.rel (0) target = $region41
    $region40: #{_lambda_.1} parent=1 // pred_region
      _
    $region41: #{_lambda_.1} parent=1 // pred_fallthru
      _
    // Predicated region
    $region42: #{_lambda_.1} parent=1 // pred_check
      _
    $region43: #{_lambda_.1} parent=1 // pred_check_branch
      %106 = sbr.rel (0) target = $region45
    $region44: #{_lambda_.1} parent=1 // pred_region
      _
    $region45: #{_lambda_.1} parent=1 // pred_fallthru
      _
    // Predicated region
    $region46: #{_lambda_.1} parent=1 // pred_check
      _
    $region47: #{_lambda_.1} parent=1 // pred_check_branch
      %108 = sbr.rel (0) target = $region49
    $region48: #{_lambda_.1} parent=1 // pred_region
      %110 = vsyncadd [#allocation10], 0
      %s111 = sshll.u32 %s11, 4
      %s112 = int_to_ptr.hbm [resolvable:$true] %s111
      %s113 = sshll.u32 [#allocation11], 4
      %s114 = int_to_ptr.vmem [resolvable:$true] %s113
      %119 = dma.hbm_to_vmem [thread:$0]  %s112, 2304, %s114, [#allocation10], 128, 128, 8
    $region49: #{_lambda_.1} parent=1 // pred_fallthru
      _
    // Predicated region
    $region50: #{_lambda_.1} parent=1 // pred_check
      _
    $region51: #{_lambda_.1} parent=1 // pred_check_branch
      %121 = sbr.rel (0) target = $region53
    $region52: #{_lambda_.1} parent=1 // pred_region
      _
    $region53: #{_lambda_.1} parent=1 // pred_fallthru
      _
    // Predicated region
    $region54: #{_lambda_.1} parent=1 // pred_check
      _
    $region55: #{_lambda_.1} parent=1 // pred_check_branch
      %123 = sbr.rel (0) target = $region57
    $region56: #{_lambda_.1} parent=1 // pred_region
      _
    $region57: #{_lambda_.1} parent=1 // pred_fallthru
      _
    // Predicated region
    $region58: #{_lambda_.1} parent=1 // pred_check
      _
    $region59: #{_lambda_.1} parent=1 // pred_check_branch
      %125 = sbr.rel (0) target = $region61
    $region60: #{_lambda_.1} parent=1 // pred_region
      %127 = vsyncadd [#allocation13], 0
      %s128 = sshll.u32 %s14, 4
      %s129 = int_to_ptr.hbm [resolvable:$true] %s128
      %s130 = sshll.u32 [#allocation12], 4
      %s131 = int_to_ptr.vmem [resolvable:$true] %s130
      %136 = dma.hbm_to_vmem [thread:$0]  %s129, 1280, %s131, [#allocation13], 128, 128, 8
    $region61: #{_lambda_.1} parent=1 // pred_fallthru
      _
    // Predicated region
    $region62: #{_lambda_.1} parent=1 // pred_check
      _
    $region63: #{_lambda_.1} parent=1 // pred_check_branch
      %138 = sbr.rel (0) target = $region65
    $region64: #{_lambda_.1} parent=1 // pred_region
      %140 = vsyncadd [#allocation13], 0
      %s141 = sshll.u32 %s15, 4
      %s142 = int_to_ptr.hbm [resolvable:$true] %s141
      %s143 = sshll.u32 [#allocation14], 4
      %s144 = int_to_ptr.vmem [resolvable:$true] %s143
      %149 = dma.hbm_to_vmem [thread:$0]  %s142, 256, %s144, [#allocation13], 128, 128, 8
    $region65: #{_lambda_.1} parent=1 // pred_fallthru
      _
    // Predicated region
    $region66: #{_lambda_.1} parent=1 // pred_check
      _
    $region67: #{_lambda_.1} parent=1 // pred_check_branch
      %151 = sbr.rel (0) target = $region69
    $region68: #{_lambda_.1} parent=1 // pred_region
      %153 = vsyncadd [#allocation16], 0
      %s154 = sshll.u32 %s16, 4
      %s155 = int_to_ptr.hbm [resolvable:$true] %s154
      %s156 = sshll.u32 [#allocation15], 4
      %s157 = int_to_ptr.vmem [resolvable:$true] %s156
      %162 = dma.hbm_to_vmem [thread:$0]  %s155, 384, %s157, [#allocation16], 128, 128, 8
    $region69: #{_lambda_.1} parent=1 // pred_fallthru
      _
    // Predicated region
    $region70: #{_lambda_.1} parent=1 // pred_check
      _
    $region71: #{_lambda_.1} parent=1 // pred_check_branch
      %164 = sbr.rel (0) target = $region73
    $region72: #{_lambda_.1} parent=1 // pred_region
      %166 = vsyncadd [#allocation16], 0
      %s167 = sshll.u32 %s17, 4
      %s168 = int_to_ptr.hbm [resolvable:$true] %s167
      %s169 = sshll.u32 [#allocation17], 4
      %s170 = int_to_ptr.vmem [resolvable:$true] %s169
      %175 = dma.hbm_to_vmem [thread:$0]  %s168, 7680, %s170, [#allocation16], 256, 256, 16
    $region73: #{_lambda_.1} parent=1 // pred_fallthru
      _
    // Predicated region
    $region74: #{_lambda_.1} parent=1 // pred_check
      _
    $region75: #{_lambda_.1} parent=1 // pred_check_branch
      %177 = sbr.rel (0) target = $region77
    $region76: #{_lambda_.1} parent=1 // pred_region
      _
    $region77: #{_lambda_.1} parent=1 // pred_fallthru
      _
    // Predicated region
    $region78: #{_lambda_.1} parent=1 // pred_check
      _
    $region79: #{_lambda_.1} parent=1 // pred_check_branch
      %179 = sbr.rel (0) target = $region81
    $region80: #{_lambda_.1} parent=1 // pred_region
      _
    $region81: #{_lambda_.1} parent=1 // pred_fallthru
      _
    // Predicated region
    $region82: #{_lambda_.1} parent=1 // pred_check
      _
    $region83: #{_lambda_.1} parent=1 // pred_check_branch
      %181 = sbr.rel (0) target = $region85
    $region84: #{_lambda_.1} parent=1 // pred_region
      _
    $region85: #{_lambda_.1} parent=1 // pred_fallthru
      _
    // Predicated region
    $region86: #{_lambda_.1} parent=1 // pred_check
      _
    $region87: #{_lambda_.1} parent=1 // pred_check_branch
      %183 = sbr.rel (0) target = $region89
    $region88: #{_lambda_.1} parent=1 // pred_region
      %185 = vsyncadd [#allocation19], 0
      %s187 = sshll.u32 %s21, 4
      %s188 = int_to_ptr.hbm [resolvable:$true] %s187
      %s189 = sshll.u32 [#allocation18], 4
      %s190 = int_to_ptr.vmem [resolvable:$true] %s189
      %192 = dma.hbm_to_vmem [thread:$0]  %s188, 16, %s190, [#allocation19]
    $region89: #{_lambda_.1} parent=1 // pred_fallthru
      _
    // Predicated region
    $region90: #{_lambda_.1} parent=1 // pred_check
      _
    $region91: #{_lambda_.1} parent=1 // pred_check_branch
      %194 = sbr.rel (0) target = $region93
    $region92: #{_lambda_.1} parent=1 // pred_region
      %196 = dma.done [#allocation4], 16
    $region93: #{_lambda_.1} parent=1 // pred_fallthru
      _
    // Predicated region
    $region94: #{_lambda_.1} parent=1 // pred_check
      _
    $region95: #{_lambda_.1} parent=1 // pred_check_branch
      %198 = sbr.rel (0) target = $region97
    $region96: #{_lambda_.1} parent=1 // pred_region
      %200 = dma.done [#allocation3], 1536
    $region97: #{_lambda_.1} parent=1 // pred_fallthru
      _
    // Predicated region
    $region98: #{_lambda_.1} parent=1 // pred_check
      _
    $region99: #{_lambda_.1} parent=1 // pred_check_branch
      %202 = sbr.rel (0) target = $region101
    $region100: #{_lambda_.1} parent=1 // pred_region
      %204 = dma.done [#allocation7], 2304
    $region101: #{_lambda_.1} parent=1 // pred_fallthru
      _
    // Predicated region
    $region102: #{_lambda_.1} parent=1 // pred_check
      _
    $region103: #{_lambda_.1} parent=1 // pred_check_branch
      %206 = sbr.rel (0) target = $region105
    $region104: #{_lambda_.1} parent=1 // pred_region
      %208 = dma.done [#allocation7], 1408
    $region105: #{_lambda_.1} parent=1 // pred_fallthru
      _
    // Predicated region
    $region106: #{_lambda_.1} parent=1 // pred_check
      _
    $region107: #{_lambda_.1} parent=1 // pred_check_branch
      %210 = sbr.rel (0) target = $region109
    $region108: #{_lambda_.1} parent=1 // pred_region
      %212 = dma.done [#allocation10], 512
    $region109: #{_lambda_.1} parent=1 // pred_fallthru
      _
    // Predicated region
    $region110: #{_lambda_.1} parent=1 // pred_check
      _
    $region111: #{_lambda_.1} parent=1 // pred_check_branch
      %214 = sbr.rel (0) target = $region113
    $region112: #{_lambda_.1} parent=1 // pred_region
      %216 = dma.done [#allocation10], 2304
    $region113: #{_lambda_.1} parent=1 // pred_fallthru
      _
    // Predicated region
    $region114: #{_lambda_.1} parent=1 // pred_check
      _
    $region115: #{_lambda_.1} parent=1 // pred_check_branch
      %218 = sbr.rel (0) target = $region117
    $region116: #{_lambda_.1} parent=1 // pred_region
      %220 = dma.done [#allocation13], 1280
    $region117: #{_lambda_.1} parent=1 // pred_fallthru
      _
    // Predicated region
    $region118: #{_lambda_.1} parent=1 // pred_check
      _
    $region119: #{_lambda_.1} parent=1 // pred_check_branch
      %222 = sbr.rel (0) target = $region121
    $region120: #{_lambda_.1} parent=1 // pred_region
      %224 = dma.done [#allocation13], 256
    $region121: #{_lambda_.1} parent=1 // pred_fallthru
      _
    // Predicated region
    $region122: #{_lambda_.1} parent=1 // pred_check
      _
    $region123: #{_lambda_.1} parent=1 // pred_check_branch
      %226 = sbr.rel (0) target = $region125
    $region124: #{_lambda_.1} parent=1 // pred_region
      %228 = dma.done [#allocation16], 384
    $region125: #{_lambda_.1} parent=1 // pred_fallthru
      _
    // Predicated region
    $region126: #{_lambda_.1} parent=1 // pred_check
      _
    $region127: #{_lambda_.1} parent=1 // pred_check_branch
      %230 = sbr.rel (0) target = $region129
    $region128: #{_lambda_.1} parent=1 // pred_region
      %232 = dma.done [#allocation16], 7680
    $region129: #{_lambda_.1} parent=1 // pred_fallthru
      _
    // Predicated region
    $region130: #{_lambda_.1} parent=1 // pred_check
      _
    $region131: #{_lambda_.1} parent=1 // pred_check_branch
      %234 = sbr.rel (0) target = $region133
    $region132: #{_lambda_.1} parent=1 // pred_region
      %236 = dma.done [#allocation19], 16
    $region133: #{_lambda_.1} parent=1 // pred_fallthru
      _
    %237 = sfence
    %s238 = sld [smem:[#allocation2]]
    %s239 = sld [smem:[#allocation2 + $0x1]]
    %s240 = sld [smem:[#allocation2 + $0x2]]
    %v241 = vld [vmem:[%s1] sm:$0xff]
    %v242 = vld [vmem:[%s1 + $0x8] sm:$0xff]
    %v243 = vld [vmem:[%s1 + $0x10] sm:$0xff]
    %v244 = vld [vmem:[%s1 + $0x18] sm:$0xff]
    %v245 = vld [vmem:[#allocation5] sm:$0xff]
    %v246 = vld [vmem:[#allocation5 + $0x8] sm:$0xff]
    %v247 = vld [vmem:[#allocation5 + $0x10] sm:$0xff]
    %v248 = vld [vmem:[#allocation5 + $0x18] sm:$0xf]
    %vm249 = vcmask 261120
    %v251 = vsel %vm249, %v245, 0
    %v254 = vsel %vm249, %v246, 0
    %v257 = vsel %vm249, %v247, 0
    %v260 = vsel %vm249, %v248, 0
    %262 = vmatpush.msra.mxu0 0.0
    %263 = vmatpush.msra.mxu0 0.0
    %264 = vmatpush.msra.mxu0 0.0
    %265 = vmatpush.msra.mxu0 0.0
    %266 = vmatpush.msra.mxu0 0.0
    %267 = vmatpush.msra.mxu0 0.0
    %268 = vmatpush.msra.mxu0 0.0
    %269 = vmatpush.msra.mxu0 0.0
    %270 = vmatpush.msra.mxu0 0.0
    %271 = vmatpush.msra.mxu0 0.0
    %272 = vmatpush.msra.mxu0 0.0
    %273 = vmatpush.msra.mxu0 0.0
    %274 = vmatpush.msra.mxu0 %v244
    %275 = vmatpush.msra.mxu0 %v243
    %276 = vmatpush.msra.mxu0 %v242
    %277 = vmatpush.msra.mxu0 %v241
    %278 = vmatmul.f32.gmra.mxu0 %v251
    %v279 = vpop.f32.mrf.mxu0
    %v280 = vadd.f32 0.0, %v279
    %281 = vmatmul.f32.gmra.mxu0 %v254
    %v282 = vpop.f32.mrf.mxu0
    %v283 = vadd.f32 0.0, %v282
    %284 = vmatmul.f32.gmra.mxu0 %v257
    %v285 = vpop.f32.mrf.mxu0
    %v286 = vadd.f32 0.0, %v285
    %287 = vmatmul.f32.gmra.mxu0 %v260
    %v288 = vpop.f32.mrf.mxu0
    %v289 = vadd.f32 0.0, %v288
    %290 = vdwg.mxu0
    %v291 = vld [vmem:[#allocation6] sm:$0xff]
    %v292 = vld [vmem:[#allocation6 + $0x8] sm:$0xff]
    %v293 = vld [vmem:[#allocation6 + $0x10] sm:$0xff]
    %v294 = vld [vmem:[#allocation6 + $0x18] sm:$0xff]
    %v295 = vld [vmem:[#allocation6 + $0x20] sm:$0xff]
    %v296 = vld [vmem:[#allocation6 + $0x28] sm:$0xff]
    %s297 = scalar_lea.vmem [#allocation5], 32
    %v298 = vld [vmem:[%s297] sm:$0xff]
    %v299 = vld [vmem:[%s297 + $0x8] sm:$0xff]
    %v300 = vld [vmem:[%s297 + $0x10] sm:$0xff]
    %v301 = vld [vmem:[%s297 + $0x18] sm:$0xf]
    %v303 = vsel %vm249, %v298, 0
    %v306 = vsel %vm249, %v299, 0
    %v309 = vsel %vm249, %v300, 0
    %v312 = vsel %vm249, %v301, 0
    %314 = vmatpush.msra.mxu0 0.0
    %315 = vmatpush.msra.mxu0 0.0
    %316 = vmatpush.msra.mxu0 0.0
    %317 = vmatpush.msra.mxu0 0.0
    %318 = vmatpush.msra.mxu0 0.0
    %319 = vmatpush.msra.mxu0 0.0
    %320 = vmatpush.msra.mxu0 0.0
    %321 = vmatpush.msra.mxu0 0.0
    %322 = vmatpush.msra.mxu0 0.0
    %323 = vmatpush.msra.mxu0 0.0
    %324 = vmatpush.msra.mxu0 0.0
    %325 = vmatpush.msra.mxu0 0.0
    %326 = vmatpush.msra.mxu0 %v244
    %327 = vmatpush.msra.mxu0 %v243
    %328 = vmatpush.msra.mxu0 %v242
    %329 = vmatpush.msra.mxu0 %v241
    %330 = vmatmul.f32.gmra.mxu0 %v303
    %v331 = vpop.f32.mrf.mxu0
    %v332 = vadd.f32 0.0, %v331
    %333 = vmatmul.f32.gmra.mxu0 %v306
    %v334 = vpop.f32.mrf.mxu0
    %v335 = vadd.f32 0.0, %v334
    %336 = vmatmul.f32.gmra.mxu0 %v309
    %v337 = vpop.f32.mrf.mxu0
    %v338 = vadd.f32 0.0, %v337
    %339 = vmatmul.f32.gmra.mxu0 %v312
    %v340 = vpop.f32.mrf.mxu0
    %v341 = vadd.f32 0.0, %v340
    %342 = vdwg.mxu0
    %s343 = scalar_lea.vmem [#allocation6], 48
    %v344 = vld [vmem:[%s343] sm:$0xff]
    %v345 = vld [vmem:[%s343 + $0x8] sm:$0xff]
    %v346 = vld [vmem:[%s343 + $0x10] sm:$0xff]
    %v347 = vld [vmem:[%s343 + $0x18] sm:$0xff]
    %v348 = vld [vmem:[%s343 + $0x20] sm:$0xff]
    %v349 = vld [vmem:[%s343 + $0x28] sm:$0xff]
    %vm350 = vcmask 392192
    %v352 = vsel %vm350, %v332, 0
    %v355 = vsel %vm350, %v335, 0
    %v358 = vsel %vm350, %v338, 0
    %v361 = vsel %vm350, %v341, 0
    %363 = vmatpush.msra.mxu0 0.0
    %364 = vmatpush.msra.mxu0 0.0
    %365 = vmatpush.msra.mxu0 0.0
    %366 = vmatpush.msra.mxu0 0.0
    %367 = vmatpush.msra.mxu0 0.0
    %368 = vmatpush.msra.mxu0 0.0
    %369 = vmatpush.msra.mxu0 0.0
    %370 = vmatpush.msra.mxu0 0.0
    %371 = vmatpush.msra.mxu0 0.0
    %372 = vmatpush.msra.mxu0 0.0
    %373 = vmatpush.msra.mxu0 %v349
    %374 = vmatpush.msra.mxu0 %v348
    %375 = vmatpush.msra.mxu0 %v347
    %376 = vmatpush.msra.mxu0 %v346
    %377 = vmatpush.msra.mxu0 %v345
    %378 = vmatpush.msra.mxu0 %v344
    %379 = vmatmul.f32.gmra.mxu0 %v352
    %v380 = vpop.f32.mrf.mxu0
    %v381 = vadd.f32 0.0, %v380
    %382 = vmatmul.f32.gmra.mxu0 %v355
    %v383 = vpop.f32.mrf.mxu0
    %v384 = vadd.f32 0.0, %v383
    %385 = vmatmul.f32.gmra.mxu0 %v358
    %v386 = vpop.f32.mrf.mxu0
    %v387 = vadd.f32 0.0, %v386
    %388 = vmatmul.f32.gmra.mxu0 %v361
    %v389 = vpop.f32.mrf.mxu0
    %v390 = vadd.f32 0.0, %v389
    %391 = vdwg.mxu0
    %v393 = vsel %vm350, %v280, 0
    %v396 = vsel %vm350, %v283, 0
    %v399 = vsel %vm350, %v286, 0
    %v402 = vsel %vm350, %v289, 0
    %404 = vmatpush.msra.mxu0 0.0
    %405 = vmatpush.msra.mxu0 0.0
    %406 = vmatpush.msra.mxu0 0.0
    %407 = vmatpush.msra.mxu0 0.0
    %408 = vmatpush.msra.mxu0 0.0
    %409 = vmatpush.msra.mxu0 0.0
    %410 = vmatpush.msra.mxu0 0.0
    %411 = vmatpush.msra.mxu0 0.0
    %412 = vmatpush.msra.mxu0 0.0
    %413 = vmatpush.msra.mxu0 0.0
    %414 = vmatpush.msra.mxu0 %v296
    %415 = vmatpush.msra.mxu0 %v295
    %416 = vmatpush.msra.mxu0 %v294
    %417 = vmatpush.msra.mxu0 %v293
    %418 = vmatpush.msra.mxu0 %v292
    %419 = vmatpush.msra.mxu0 %v291
    %420 = vmatmul.f32.gmra.mxu0 %v393
    %v421 = vpop.f32.mrf.mxu0
    %v422 = vadd.f32 %v381, %v421
    %423 = vmatmul.f32.gmra.mxu0 %v396
    %v424 = vpop.f32.mrf.mxu0
    %v425 = vadd.f32 %v384, %v424
    %426 = vmatmul.f32.gmra.mxu0 %v399
    %v427 = vpop.f32.mrf.mxu0
    %v428 = vadd.f32 %v387, %v427
    %429 = vmatmul.f32.gmra.mxu0 %v402
    %v430 = vpop.f32.mrf.mxu0
    %v431 = vadd.f32 %v390, %v430
    %432 = vdwg.mxu0
    %s433 = scalar_lea.vmem [#allocation5], 64
    %v434 = vld [vmem:[%s433] sm:$0xff]
    %v435 = vld [vmem:[%s433 + $0x8] sm:$0xff]
    %v436 = vld [vmem:[%s433 + $0x10] sm:$0xff]
    %v437 = vld [vmem:[%s433 + $0x18] sm:$0xf]
    %v439 = vsel %vm249, %v434, 0
    %v442 = vsel %vm249, %v435, 0
    %v445 = vsel %vm249, %v436, 0
    %v448 = vsel %vm249, %v437, 0
    %450 = vmatpush.msra.mxu0 0.0
    %451 = vmatpush.msra.mxu0 0.0
    %452 = vmatpush.msra.mxu0 0.0
    %453 = vmatpush.msra.mxu0 0.0
    %454 = vmatpush.msra.mxu0 0.0
    %455 = vmatpush.msra.mxu0 0.0
    %456 = vmatpush.msra.mxu0 0.0
    %457 = vmatpush.msra.mxu0 0.0
    %458 = vmatpush.msra.mxu0 0.0
    %459 = vmatpush.msra.mxu0 0.0
    %460 = vmatpush.msra.mxu0 0.0
    %461 = vmatpush.msra.mxu0 0.0
    %462 = vmatpush.msra.mxu0 %v244
    %463 = vmatpush.msra.mxu0 %v243
    %464 = vmatpush.msra.mxu0 %v242
    %465 = vmatpush.msra.mxu0 %v241
    %466 = vmatmul.f32.gmra.mxu0 %v439
    %v467 = vpop.f32.mrf.mxu0
    %v468 = vadd.f32 0.0, %v467
    %469 = vmatmul.f32.gmra.mxu0 %v442
    %v470 = vpop.f32.mrf.mxu0
    %v471 = vadd.f32 0.0, %v470
    %472 = vmatmul.f32.gmra.mxu0 %v445
    %v473 = vpop.f32.mrf.mxu0
    %v474 = vadd.f32 0.0, %v473
    %475 = vmatmul.f32.gmra.mxu0 %v448
    %v476 = vpop.f32.mrf.mxu0
    %v477 = vadd.f32 0.0, %v476
    %478 = vdwg.mxu0
    %s479 = scalar_lea.vmem [#allocation6], 96
    %v480 = vld [vmem:[%s479] sm:$0xff]
    %v481 = vld [vmem:[%s479 + $0x8] sm:$0xff]
    %v482 = vld [vmem:[%s479 + $0x10] sm:$0xff]
    %v483 = vld [vmem:[%s479 + $0x18] sm:$0xff]
    %v484 = vld [vmem:[%s479 + $0x20] sm:$0xff]
    %v485 = vld [vmem:[%s479 + $0x28] sm:$0xff]
    %v487 = vsel %vm350, %v468, 0
    %v490 = vsel %vm350, %v471, 0
    %v493 = vsel %vm350, %v474, 0
    %v496 = vsel %vm350, %v477, 0
    %498 = vmatpush.msra.mxu0 0.0
    %499 = vmatpush.msra.mxu0 0.0
    %500 = vmatpush.msra.mxu0 0.0
    %501 = vmatpush.msra.mxu0 0.0
    %502 = vmatpush.msra.mxu0 0.0
    %503 = vmatpush.msra.mxu0 0.0
    %504 = vmatpush.msra.mxu0 0.0
    %505 = vmatpush.msra.mxu0 0.0
    %506 = vmatpush.msra.mxu0 0.0
    %507 = vmatpush.msra.mxu0 0.0
    %508 = vmatpush.msra.mxu0 %v485
    %509 = vmatpush.msra.mxu0 %v484
    %510 = vmatpush.msra.mxu0 %v483
    %511 = vmatpush.msra.mxu0 %v482
    %512 = vmatpush.msra.mxu0 %v481
    %513 = vmatpush.msra.mxu0 %v480
    %514 = vmatmul.f32.gmra.mxu0 %v487
    %v515 = vpop.f32.mrf.mxu0
    %v516 = vadd.f32 0.0, %v515
    %517 = vmatmul.f32.gmra.mxu0 %v490
    %v518 = vpop.f32.mrf.mxu0
    %v519 = vadd.f32 0.0, %v518
    %520 = vmatmul.f32.gmra.mxu0 %v493
    %v521 = vpop.f32.mrf.mxu0
    %v522 = vadd.f32 0.0, %v521
    %523 = vmatmul.f32.gmra.mxu0 %v496
    %v524 = vpop.f32.mrf.mxu0
    %v525 = vadd.f32 0.0, %v524
    %526 = vdwg.mxu0
    %v527 = vadd.f32 %v422, %v516
    %v528 = vadd.f32 %v425, %v519
    %v529 = vadd.f32 %v428, %v522
    %v530 = vadd.f32 %v431, %v525
    %v531 = vld [vmem:[%s4] sm:$0x1]
    %v532 = vld [vmem:[%s5] sm:$0x1]
    %v533 = vld [vmem:[#allocation8] sm:$0xff]
    %v534 = vld [vmem:[#allocation8 + $0x8] sm:$0xff]
    %v535 = vld [vmem:[#allocation8 + $0x10] sm:$0xff]
    %v536 = vld [vmem:[#allocation8 + $0x18] sm:$0xff]
    %v537 = vld [vmem:[#allocation8 + $0x20] sm:$0xff]
    %v538 = vld [vmem:[#allocation8 + $0x28] sm:$0xff]
    %v539 = vld [vmem:[#allocation8 + $0x30] sm:$0xff]
    %v540 = vld [vmem:[#allocation8 + $0x38] sm:$0xff]
    %v541 = vld [vmem:[#allocation8 + $0x40] sm:$0xff]
    %v542 = vld [vmem:[#allocation8 + $0x48] sm:$0xff]
    %v543 = vld [vmem:[#allocation8 + $0x50] sm:$0xf]
    %v544 = vld [vmem:[%s7] sm:$0x3f]
    %vm545 = vcmask 687104
    %v546 = vsel %vm545, %v527, 0.0
    %v547 = vsel %vm545, %v528, 0.0
    %v548 = vadd.f32 %v546, %v547
    %v549 = vsel %vm545, %v529, 0.0
    %v550 = vadd.f32 %v548, %v549
    %vm551 = vcmask 683008
    %v552 = vsel %vm551, %v530, 0.0
    %v553 = vadd.f32 %v550, %v552
    %v554 = vrot.slane %v553, 4
    %v555 = vadd.f32 %v553, %v554
    %v556 = vrot.slane %v555, 2
    %v557 = vadd.f32 %v555, %v556
    %v558 = vrot.slane %v557, 1
    %v559 = vadd.f32 %v557, %v558
    %v561 = vsel %vm545, %v559, 0
    %vm563 = vcmask 1043456
    %v565 = vsel %vm563, %v543, 0
    %567 = vmatpush.msra.mxu0 0.0
    %568 = vmatpush.msra.mxu0 0.0
    %569 = vmatpush.msra.mxu0 0.0
    %570 = vmatpush.msra.mxu0 0.0
    %571 = vmatpush.msra.mxu0 0.0
    %572 = vmatpush.msra.mxu0 %v565
    %573 = vmatpush.msra.mxu0 %v542
    %574 = vmatpush.msra.mxu0 %v541
    %575 = vmatpush.msra.mxu0 %v540
    %576 = vmatpush.msra.mxu0 %v539
    %577 = vmatpush.msra.mxu0 %v538
    %578 = vmatpush.msra.mxu0 %v537
    %579 = vmatpush.msra.mxu0 %v536
    %580 = vmatpush.msra.mxu0 %v535
    %581 = vmatpush.msra.mxu0 %v534
    %582 = vmatpush.msra.mxu0 %v533
    %583 = vmatmul.f32.gmra.mxu0 %v561
    %v584 = vpop.f32.mrf.mxu0
    %v585 = vadd.f32 0.0, %v584
    %586 = vdwg.mxu0
    %v587 = vmul.f32 %v527, %v527
    %v588 = vmul.f32 %v528, %v528
    %v589 = vmul.f32 %v529, %v529
    %v590 = vmul.f32 %v530, %v530
    %v591 = vsel %vm545, %v587, 0.0
    %v592 = vsel %vm545, %v588, 0.0
    %v593 = vadd.f32 %v591, %v592
    %v594 = vsel %vm545, %v589, 0.0
    %v595 = vadd.f32 %v593, %v594
    %v596 = vsel %vm551, %v590, 0.0
    %v597 = vadd.f32 %v595, %v596
    %v598 = vrot.slane %v597, 4
    %v599 = vadd.f32 %v597, %v598
    %v600 = vrot.slane %v599, 2
    %v601 = vadd.f32 %v599, %v600
    %v602 = vrot.slane %v601, 1
    %v603 = vadd.f32 %v601, %v602
    %v605 = vsel %vm545, %v603, 0
    %607 = vmatpush.msra.mxu0 0.0
    %608 = vmatpush.msra.mxu0 0.0
    %609 = vmatpush.msra.mxu0 0.0
    %610 = vmatpush.msra.mxu0 0.0
    %611 = vmatpush.msra.mxu0 0.0
    %612 = vmatpush.msra.mxu0 %v565
    %613 = vmatpush.msra.mxu0 %v542
    %614 = vmatpush.msra.mxu0 %v541
    %615 = vmatpush.msra.mxu0 %v540
    %616 = vmatpush.msra.mxu0 %v539
    %617 = vmatpush.msra.mxu0 %v538
    %618 = vmatpush.msra.mxu0 %v537
    %619 = vmatpush.msra.mxu0 %v536
    %620 = vmatpush.msra.mxu0 %v535
    %621 = vmatpush.msra.mxu0 %v534
    %622 = vmatpush.msra.mxu0 %v533
    %623 = vmatmul.f32.gmra.mxu0 %v605
    %v624 = vpop.f32.mrf.mxu0
    %v625 = vadd.f32 0.0, %v624
    %626 = vdwg.mxu0
    %v627 = vrcp.pop 392.0
    %v628 = vmul.f32 392.0, %v627
    %v629 = vsub.f32 1.0, %v628
    %v630 = vmul.f32 %v627, %v629
    %v631 = vadd.f32 %v627, %v630
    %vm632 = vweird.f32 %v627
    %v633 = vsel %vm632, %v627, %v631
    %v634 = vmul.f32 %v585, %v633
    %v635 = vmul.f32 %v625, %v633
    %v636 = vmul.f32 %v634, %v634
    %v637 = vsub.f32 %v635, %v636
    %v638 = vadd.f32 %v637, 1e-05
    %v639 = vrsqrt.pop %v638
    %v640 = vmul.f32 %v639, %v638
    %v641 = vmul.f32 %v640, %v639
    %v642 = vmul.f32 0.5, %v641
    %v643 = vsub.f32 1.5, %v642
    %v644 = vmul.f32 %v639, %v643
    %vm645 = vweird.f32 %v638
    %vm646 = vweird.f32 %v639
    %vm647 = vmor %vm645, %vm646
    %v648 = vsel %vm647, %v639, %v644
    %v649 = vmul.f32 %v531, %v648
    %v650 = vmul.f32 %v634, %v649
    %v651 = vsub.f32 %v532, %v650
    %vm652 = vcmask 48128
    %v654 = vsel %vm652, %v649, 0
    %vm656 = vcmask 1045504
    %v658 = vsel %vm656, %v544, 0
    %660 = vmatpush.msra.mxu0 0.0
    %661 = vmatpush.msra.mxu0 0.0
    %662 = vmatpush.msra.mxu0 0.0
    %663 = vmatpush.msra.mxu0 0.0
    %664 = vmatpush.msra.mxu0 0.0
    %665 = vmatpush.msra.mxu0 0.0
    %666 = vmatpush.msra.mxu0 0.0
    %667 = vmatpush.msra.mxu0 0.0
    %668 = vmatpush.msra.mxu0 0.0
    %669 = vmatpush.msra.mxu0 0.0
    %670 = vmatpush.msra.mxu0 0.0
    %671 = vmatpush.msra.mxu0 0.0
    %672 = vmatpush.msra.mxu0 0.0
    %673 = vmatpush.msra.mxu0 0.0
    %674 = vmatpush.msra.mxu0 0.0
    %675 = vmatpush.msra.mxu0 %v658
    %676 = vmatmul.f32.gmra.mxu0 %v654
    %v677 = vpop.f32.mrf.mxu0
    %v678 = vadd.f32 0.0, %v677
    %679 = vdwg.mxu0
    %v680 = vperm.slane %v678, 0
    %v681 = vmul.f32 %v527, %v680
    %v682 = vmul.f32 %v528, %v680
    %v683 = vmul.f32 %v529, %v680
    %v684 = vmul.f32 %v530, %v680
    %v686 = vsel %vm652, %v651, 0
    %688 = vmatpush.msra.mxu0 0.0
    %689 = vmatpush.msra.mxu0 0.0
    %690 = vmatpush.msra.mxu0 0.0
    %691 = vmatpush.msra.mxu0 0.0
    %692 = vmatpush.msra.mxu0 0.0
    %693 = vmatpush.msra.mxu0 0.0
    %694 = vmatpush.msra.mxu0 0.0
    %695 = vmatpush.msra.mxu0 0.0
    %696 = vmatpush.msra.mxu0 0.0
    %697 = vmatpush.msra.mxu0 0.0
    %698 = vmatpush.msra.mxu0 0.0
    %699 = vmatpush.msra.mxu0 0.0
    %700 = vmatpush.msra.mxu0 0.0
    %701 = vmatpush.msra.mxu0 0.0
    %702 = vmatpush.msra.mxu0 0.0
    %703 = vmatpush.msra.mxu0 %v658
    %704 = vmatmul.f32.gmra.mxu0 %v686
    %v705 = vpop.f32.mrf.mxu0
    %v706 = vadd.f32 0.0, %v705
    %707 = vdwg.mxu0
    %v708 = vperm.slane %v706, 0
    %v709 = vadd.f32 %v681, %v708
    %v710 = vadd.f32 %v682, %v708
    %v711 = vadd.f32 %v683, %v708
    %v712 = vadd.f32 %v684, %v708
    %vm713 = vcmp.ge.f32.partialorder %v709, 0.0
    %vm714 = vcmp.ge.f32.partialorder %v710, 0.0
    %vm715 = vcmp.ge.f32.partialorder %v711, 0.0
    %vm716 = vcmp.ge.f32.partialorder %v712, 0.0
    %v717 = vstv %s238
    %v718 = vmul.f32 %v717, %v709
    %v719 = vmul.f32 %v717, %v710
    %v720 = vmul.f32 %v717, %v711
    %v721 = vmul.f32 %v717, %v712
    %v722 = vsel %vm713, %v709, %v718
    %v723 = vsel %vm714, %v710, %v719
    %v724 = vsel %vm715, %v711, %v720
    %v725 = vsel %vm716, %v712, %v721
    %v726 = vld [vmem:[%s9] sm:$0xff]
    %v727 = vld [vmem:[%s9 + $0x8] sm:$0xff]
    %v728 = vld [vmem:[%s9 + $0x10] sm:$0xff]
    %v729 = vld [vmem:[%s9 + $0x18] sm:$0xff]
    %v730 = vld [vmem:[%s9 + $0x20] sm:$0xff]
    %v731 = vld [vmem:[%s9 + $0x28] sm:$0xff]
    %v732 = vld [vmem:[%s9 + $0x30] sm:$0xff]
    %v733 = vld [vmem:[%s9 + $0x38] sm:$0xff]
    %v734 = vld [vmem:[%s9 + $0x40] sm:$0xff]
    %v735 = vld [vmem:[%s9 + $0x48] sm:$0xff]
    %v736 = vld [vmem:[%s9 + $0x50] sm:$0xf]
    %v738 = vsel %vm545, %v722, 0
    %v741 = vsel %vm545, %v723, 0
    %v744 = vsel %vm545, %v724, 0
    %v747 = vsel %vm545, %v725, 0
    %v750 = vsel %vm563, %v736, 0
    %752 = vmatpush.msra.mxu0 0.0
    %753 = vmatpush.msra.mxu0 0.0
    %754 = vmatpush.msra.mxu0 0.0
    %755 = vmatpush.msra.mxu0 0.0
    %756 = vmatpush.msra.mxu0 0.0
    %757 = vmatpush.msra.mxu0 %v750
    %758 = vmatpush.msra.mxu0 %v735
    %759 = vmatpush.msra.mxu0 %v734
    %760 = vmatpush.msra.mxu0 %v733
    %761 = vmatpush.msra.mxu0 %v732
    %762 = vmatpush.msra.mxu0 %v731
    %763 = vmatpush.msra.mxu0 %v730
    %764 = vmatpush.msra.mxu0 %v729
    %765 = vmatpush.msra.mxu0 %v728
    %766 = vmatpush.msra.mxu0 %v727
    %767 = vmatpush.msra.mxu0 %v726
    %768 = vmatmul.f32.gmra.mxu0 %v738
    %v769 = vpop.f32.mrf.mxu0
    %v770 = vadd.f32 0.0, %v769
    %771 = vmatmul.f32.gmra.mxu0 %v741
    %v772 = vpop.f32.mrf.mxu0
    %v773 = vadd.f32 0.0, %v772
    %774 = vmatmul.f32.gmra.mxu0 %v744
    %v775 = vpop.f32.mrf.mxu0
    %v776 = vadd.f32 0.0, %v775
    %777 = vmatmul.f32.gmra.mxu0 %v747
    %v778 = vpop.f32.mrf.mxu0
    %v779 = vadd.f32 0.0, %v778
    %780 = vdwg.mxu0
    %s781 = scalar_lea.vmem %s9, 88
    %v782 = vld [vmem:[%s781] sm:$0xff]
    %v783 = vld [vmem:[%s781 + $0x8] sm:$0xff]
    %v784 = vld [vmem:[%s781 + $0x10] sm:$0xff]
    %v785 = vld [vmem:[%s781 + $0x18] sm:$0xff]
    %v786 = vld [vmem:[%s781 + $0x20] sm:$0xff]
    %v787 = vld [vmem:[%s781 + $0x28] sm:$0xff]
    %v788 = vld [vmem:[%s781 + $0x30] sm:$0xff]
    %v789 = vld [vmem:[%s781 + $0x38] sm:$0xff]
    %v790 = vld [vmem:[%s781 + $0x40] sm:$0xff]
    %v791 = vld [vmem:[%s781 + $0x48] sm:$0xff]
    %v792 = vld [vmem:[%s781 + $0x50] sm:$0xf]
    %v794 = vsel %vm563, %v792, 0
    %796 = vmatpush.msra.mxu0 0.0
    %797 = vmatpush.msra.mxu0 0.0
    %798 = vmatpush.msra.mxu0 0.0
    %799 = vmatpush.msra.mxu0 0.0
    %800 = vmatpush.msra.mxu0 0.0
    %801 = vmatpush.msra.mxu0 %v794
    %802 = vmatpush.msra.mxu0 %v791
    %803 = vmatpush.msra.mxu0 %v790
    %804 = vmatpush.msra.mxu0 %v789
    %805 = vmatpush.msra.mxu0 %v788
    %806 = vmatpush.msra.mxu0 %v787
    %807 = vmatpush.msra.mxu0 %v786
    %808 = vmatpush.msra.mxu0 %v785
    %809 = vmatpush.msra.mxu0 %v784
    %810 = vmatpush.msra.mxu0 %v783
    %811 = vmatpush.msra.mxu0 %v782
    %812 = vmatmul.f32.gmra.mxu0 %v738
    %v813 = vpop.f32.mrf.mxu0
    %v814 = vadd.f32 0.0, %v813
    %815 = vmatmul.f32.gmra.mxu0 %v741
    %v816 = vpop.f32.mrf.mxu0
    %v817 = vadd.f32 0.0, %v816
    %818 = vmatmul.f32.gmra.mxu0 %v744
    %v819 = vpop.f32.mrf.mxu0
    %v820 = vadd.f32 0.0, %v819
    %821 = vmatmul.f32.gmra.mxu0 %v747
    %v822 = vpop.f32.mrf.mxu0
    %v823 = vadd.f32 0.0, %v822
    %824 = vdwg.mxu0
    %v825 = vld [vmem:[#allocation9] sm:$0xff]
    %v826 = vld [vmem:[#allocation9 + $0x8] sm:$0x3f]
    %vm827 = vcmask 228352
    %v829 = vsel %vm827, %v825, 0
    %v832 = vsel %vm827, %v826, 0
    %v835 = vsel %vm563, %v779, 0
    %837 = vmatpush.msra.mxu0 0.0
    %838 = vmatpush.msra.mxu0 0.0
    %839 = vmatpush.msra.mxu0 0.0
    %840 = vmatpush.msra.mxu0 0.0
    %841 = vmatpush.msra.mxu0 0.0
    %842 = vmatpush.msra.mxu0 0.0
    %843 = vmatpush.msra.mxu0 0.0
    %844 = vmatpush.msra.mxu0 0.0
    %845 = vmatpush.msra.mxu0 0.0
    %846 = vmatpush.msra.mxu0 0.0
    %847 = vmatpush.msra.mxu0 0.0
    %848 = vmatpush.msra.mxu0 0.0
    %849 = vmatpush.msra.mxu0 %v835
    %850 = vmatpush.msra.mxu0 %v776
    %851 = vmatpush.msra.mxu0 %v773
    %852 = vmatpush.msra.mxu0 %v770
    %853 = vmatmul.f32.gmra.mxu0 %v829
    %v854 = vpop.f32.mrf.mxu0
    %v855 = vadd.f32 0.0, %v854
    %856 = vmatmul.f32.gmra.mxu0 %v832
    %v857 = vpop.f32.mrf.mxu0
    %v858 = vadd.f32 0.0, %v857
    %859 = vdwg.mxu0
    %v861 = vsel %vm563, %v823, 0
    %863 = vmatpush.msra.mxu0 0.0
    %864 = vmatpush.msra.mxu0 0.0
    %865 = vmatpush.msra.mxu0 0.0
    %866 = vmatpush.msra.mxu0 0.0
    %867 = vmatpush.msra.mxu0 0.0
    %868 = vmatpush.msra.mxu0 0.0
    %869 = vmatpush.msra.mxu0 0.0
    %870 = vmatpush.msra.mxu0 0.0
    %871 = vmatpush.msra.mxu0 0.0
    %872 = vmatpush.msra.mxu0 0.0
    %873 = vmatpush.msra.mxu0 0.0
    %874 = vmatpush.msra.mxu0 0.0
    %875 = vmatpush.msra.mxu0 %v861
    %876 = vmatpush.msra.mxu0 %v820
    %877 = vmatpush.msra.mxu0 %v817
    %878 = vmatpush.msra.mxu0 %v814
    %879 = vmatmul.f32.gmra.mxu0 %v829
    %v880 = vpop.f32.mrf.mxu0
    %v881 = vadd.f32 0.0, %v880
    %882 = vmatmul.f32.gmra.mxu0 %v832
    %v883 = vpop.f32.mrf.mxu0
    %v884 = vadd.f32 0.0, %v883
    %885 = vdwg.mxu0
    %v886 = vmax.f32 %v855, %v881
    %v887 = vmax.f32 %v858, %v884
    %s888 = scalar_lea.vmem [#allocation9], 16
    %v889 = vld [vmem:[%s888] sm:$0xff]
    %v890 = vld [vmem:[%s888 + $0x8] sm:$0x3f]
    %v892 = vsel %vm827, %v889, 0
    %v895 = vsel %vm827, %v890, 0
    %897 = vmatpush.msra.mxu0 0.0
    %898 = vmatpush.msra.mxu0 0.0
    %899 = vmatpush.msra.mxu0 0.0
    %900 = vmatpush.msra.mxu0 0.0
    %901 = vmatpush.msra.mxu0 0.0
    %902 = vmatpush.msra.mxu0 0.0
    %903 = vmatpush.msra.mxu0 0.0
    %904 = vmatpush.msra.mxu0 0.0
    %905 = vmatpush.msra.mxu0 0.0
    %906 = vmatpush.msra.mxu0 0.0
    %907 = vmatpush.msra.mxu0 0.0
    %908 = vmatpush.msra.mxu0 0.0
    %909 = vmatpush.msra.mxu0 %v835
    %910 = vmatpush.msra.mxu0 %v776
    %911 = vmatpush.msra.mxu0 %v773
    %912 = vmatpush.msra.mxu0 %v770
    %913 = vmatmul.f32.gmra.mxu0 %v892
    %v914 = vpop.f32.mrf.mxu0
    %v915 = vadd.f32 0.0, %v914
    %916 = vmatmul.f32.gmra.mxu0 %v895
    %v917 = vpop.f32.mrf.mxu0
    %v918 = vadd.f32 0.0, %v917
    %919 = vdwg.mxu0
    %920 = vmatpush.msra.mxu0 0.0
    %921 = vmatpush.msra.mxu0 0.0
    %922 = vmatpush.msra.mxu0 0.0
    %923 = vmatpush.msra.mxu0 0.0
    %924 = vmatpush.msra.mxu0 0.0
    %925 = vmatpush.msra.mxu0 0.0
    %926 = vmatpush.msra.mxu0 0.0
    %927 = vmatpush.msra.mxu0 0.0
    %928 = vmatpush.msra.mxu0 0.0
    %929 = vmatpush.msra.mxu0 0.0
    %930 = vmatpush.msra.mxu0 0.0
    %931 = vmatpush.msra.mxu0 0.0
    %932 = vmatpush.msra.mxu0 %v861
    %933 = vmatpush.msra.mxu0 %v820
    %934 = vmatpush.msra.mxu0 %v817
    %935 = vmatpush.msra.mxu0 %v814
    %936 = vmatmul.f32.gmra.mxu0 %v892
    %v937 = vpop.f32.mrf.mxu0
    %v938 = vadd.f32 0.0, %v937
    %939 = vmatmul.f32.gmra.mxu0 %v895
    %v940 = vpop.f32.mrf.mxu0
    %v941 = vadd.f32 0.0, %v940
    %942 = vdwg.mxu0
    %v943 = vmax.f32 %v915, %v938
    %v944 = vmax.f32 %v918, %v941
    %v945 = vmax.f32 %v886, %v943
    %v946 = vmax.f32 %v887, %v944
    %v947 = vld [vmem:[%s10] sm:$0xff]
    %v948 = vld [vmem:[%s10 + $0x8] sm:$0x3]
    %vm949 = vcmask 113664
    %v951 = vsel %vm949, %v947, 0
    %v954 = vsel %vm949, %v948, 0
    %v957 = vsel %vm656, %v946, 0
    %959 = vmatpush.msra.mxu0 0.0
    %960 = vmatpush.msra.mxu0 0.0
    %961 = vmatpush.msra.mxu0 0.0
    %962 = vmatpush.msra.mxu0 0.0
    %963 = vmatpush.msra.mxu0 0.0
    %964 = vmatpush.msra.mxu0 0.0
    %965 = vmatpush.msra.mxu0 0.0
    %966 = vmatpush.msra.mxu0 0.0
    %967 = vmatpush.msra.mxu0 0.0
    %968 = vmatpush.msra.mxu0 0.0
    %969 = vmatpush.msra.mxu0 0.0
    %970 = vmatpush.msra.mxu0 0.0
    %971 = vmatpush.msra.mxu0 0.0
    %972 = vmatpush.msra.mxu0 0.0
    %973 = vmatpush.msra.mxu0 %v957
    %974 = vmatpush.msra.mxu0 %v945
    %975 = vmatmul.f32.gmra.mxu0 %v951
    %v976 = vpop.f32.mrf.mxu0
    %v977 = vadd.f32 0.0, %v976
    %978 = vmatmul.f32.gmra.mxu0 %v954
    %v979 = vpop.f32.mrf.mxu0
    %v980 = vadd.f32 0.0, %v979
    %981 = vdwg.mxu0
    %v982 = vld [vmem:[#allocation11] sm:$0xff]
    %v983 = vld [vmem:[#allocation11 + $0x8] sm:$0xff]
    %v984 = vld [vmem:[#allocation11 + $0x10] sm:$0xff]
    %v985 = vld [vmem:[#allocation11 + $0x18] sm:$0xff]
    %v986 = vld [vmem:[#allocation11 + $0x20] sm:$0xff]
    %v987 = vld [vmem:[#allocation11 + $0x28] sm:$0x3]
    %s988 = scalar_lea.vmem %s10, 16
    %v989 = vld [vmem:[%s988] sm:$0xff]
    %v990 = vld [vmem:[%s988 + $0x8] sm:$0x3]
    %v992 = vsel %vm949, %v989, 0
    %v995 = vsel %vm949, %v990, 0
    %997 = vmatpush.msra.mxu0 0.0
    %998 = vmatpush.msra.mxu0 0.0
    %999 = vmatpush.msra.mxu0 0.0
    %1000 = vmatpush.msra.mxu0 0.0
    %1001 = vmatpush.msra.mxu0 0.0
    %1002 = vmatpush.msra.mxu0 0.0
    %1003 = vmatpush.msra.mxu0 0.0
    %1004 = vmatpush.msra.mxu0 0.0
    %1005 = vmatpush.msra.mxu0 0.0
    %1006 = vmatpush.msra.mxu0 0.0
    %1007 = vmatpush.msra.mxu0 0.0
    %1008 = vmatpush.msra.mxu0 0.0
    %1009 = vmatpush.msra.mxu0 0.0
    %1010 = vmatpush.msra.mxu0 0.0
    %1011 = vmatpush.msra.mxu0 %v957
    %1012 = vmatpush.msra.mxu0 %v945
    %1013 = vmatmul.f32.gmra.mxu0 %v992
    %v1014 = vpop.f32.mrf.mxu0
    %v1015 = vadd.f32 0.0, %v1014
    %1016 = vmatmul.f32.gmra.mxu0 %v995
    %v1017 = vpop.f32.mrf.mxu0
    %v1018 = vadd.f32 0.0, %v1017
    %1019 = vdwg.mxu0
    %s1020 = scalar_lea.vmem [#allocation11], 48
    %v1021 = vld [vmem:[%s1020] sm:$0xff]
    %v1022 = vld [vmem:[%s1020 + $0x8] sm:$0xff]
    %v1023 = vld [vmem:[%s1020 + $0x10] sm:$0xff]
    %v1024 = vld [vmem:[%s1020 + $0x18] sm:$0xff]
    %v1025 = vld [vmem:[%s1020 + $0x20] sm:$0xff]
    %v1026 = vld [vmem:[%s1020 + $0x28] sm:$0x3]
    %vm1027 = vcmask 343040
    %v1029 = vsel %vm1027, %v1015, 0
    %v1032 = vsel %vm1027, %v1018, 0
    %vm1034 = vcmask 1041408
    %v1036 = vsel %vm1034, %v1026, 0
    %1038 = vmatpush.msra.mxu0 0.0
    %1039 = vmatpush.msra.mxu0 0.0
    %1040 = vmatpush.msra.mxu0 0.0
    %1041 = vmatpush.msra.mxu0 0.0
    %1042 = vmatpush.msra.mxu0 0.0
    %1043 = vmatpush.msra.mxu0 0.0
    %1044 = vmatpush.msra.mxu0 0.0
    %1045 = vmatpush.msra.mxu0 0.0
    %1046 = vmatpush.msra.mxu0 0.0
    %1047 = vmatpush.msra.mxu0 0.0
    %1048 = vmatpush.msra.mxu0 %v1036
    %1049 = vmatpush.msra.mxu0 %v1025
    %1050 = vmatpush.msra.mxu0 %v1024
    %1051 = vmatpush.msra.mxu0 %v1023
    %1052 = vmatpush.msra.mxu0 %v1022
    %1053 = vmatpush.msra.mxu0 %v1021
    %1054 = vmatmul.f32.gmra.mxu0 %v1029
    %v1055 = vpop.f32.mrf.mxu0
    %v1056 = vadd.f32 0.0, %v1055
    %1057 = vmatmul.f32.gmra.mxu0 %v1032
    %v1058 = vpop.f32.mrf.mxu0
    %v1059 = vadd.f32 0.0, %v1058
    %1060 = vdwg.mxu0
    %v1062 = vsel %vm1027, %v977, 0
    %v1065 = vsel %vm1027, %v980, 0
    %v1068 = vsel %vm1034, %v987, 0
    %1070 = vmatpush.msra.mxu0 0.0
    %1071 = vmatpush.msra.mxu0 0.0
    %1072 = vmatpush.msra.mxu0 0.0
    %1073 = vmatpush.msra.mxu0 0.0
    %1074 = vmatpush.msra.mxu0 0.0
    %1075 = vmatpush.msra.mxu0 0.0
    %1076 = vmatpush.msra.mxu0 0.0
    %1077 = vmatpush.msra.mxu0 0.0
    %1078 = vmatpush.msra.mxu0 0.0
    %1079 = vmatpush.msra.mxu0 0.0
    %1080 = vmatpush.msra.mxu0 %v1068
    %1081 = vmatpush.msra.mxu0 %v986
    %1082 = vmatpush.msra.mxu0 %v985
    %1083 = vmatpush.msra.mxu0 %v984
    %1084 = vmatpush.msra.mxu0 %v983
    %1085 = vmatpush.msra.mxu0 %v982
    %1086 = vmatmul.f32.gmra.mxu0 %v1062
    %v1087 = vpop.f32.mrf.mxu0
    %v1088 = vadd.f32 %v1056, %v1087
    %1089 = vmatmul.f32.gmra.mxu0 %v1065
    %v1090 = vpop.f32.mrf.mxu0
    %v1091 = vadd.f32 %v1059, %v1090
    %1092 = vdwg.mxu0
    %s1093 = scalar_lea.vmem %s10, 32
    %v1094 = vld [vmem:[%s1093] sm:$0xff]
    %v1095 = vld [vmem:[%s1093 + $0x8] sm:$0x3]
    %v1097 = vsel %vm949, %v1094, 0
    %v1100 = vsel %vm949, %v1095, 0
    %1102 = vmatpush.msra.mxu0 0.0
    %1103 = vmatpush.msra.mxu0 0.0
    %1104 = vmatpush.msra.mxu0 0.0
    %1105 = vmatpush.msra.mxu0 0.0
    %1106 = vmatpush.msra.mxu0 0.0
    %1107 = vmatpush.msra.mxu0 0.0
    %1108 = vmatpush.msra.mxu0 0.0
    %1109 = vmatpush.msra.mxu0 0.0
    %1110 = vmatpush.msra.mxu0 0.0
    %1111 = vmatpush.msra.mxu0 0.0
    %1112 = vmatpush.msra.mxu0 0.0
    %1113 = vmatpush.msra.mxu0 0.0
    %1114 = vmatpush.msra.mxu0 0.0
    %1115 = vmatpush.msra.mxu0 0.0
    %1116 = vmatpush.msra.mxu0 %v957
    %1117 = vmatpush.msra.mxu0 %v945
    %1118 = vmatmul.f32.gmra.mxu0 %v1097
    %v1119 = vpop.f32.mrf.mxu0
    %v1120 = vadd.f32 0.0, %v1119
    %1121 = vmatmul.f32.gmra.mxu0 %v1100
    %v1122 = vpop.f32.mrf.mxu0
    %v1123 = vadd.f32 0.0, %v1122
    %1124 = vdwg.mxu0
    %s1125 = scalar_lea.vmem [#allocation11], 96
    %v1126 = vld [vmem:[%s1125] sm:$0xff]
    %v1127 = vld [vmem:[%s1125 + $0x8] sm:$0xff]
    %v1128 = vld [vmem:[%s1125 + $0x10] sm:$0xff]
    %v1129 = vld [vmem:[%s1125 + $0x18] sm:$0xff]
    %v1130 = vld [vmem:[%s1125 + $0x20] sm:$0xff]
    %v1131 = vld [vmem:[%s1125 + $0x28] sm:$0x3]
    %v1133 = vsel %vm1027, %v1120, 0
    %v1136 = vsel %vm1027, %v1123, 0
    %v1139 = vsel %vm1034, %v1131, 0
    %1141 = vmatpush.msra.mxu0 0.0
    %1142 = vmatpush.msra.mxu0 0.0
    %1143 = vmatpush.msra.mxu0 0.0
    %1144 = vmatpush.msra.mxu0 0.0
    %1145 = vmatpush.msra.mxu0 0.0
    %1146 = vmatpush.msra.mxu0 0.0
    %1147 = vmatpush.msra.mxu0 0.0
    %1148 = vmatpush.msra.mxu0 0.0
    %1149 = vmatpush.msra.mxu0 0.0
    %1150 = vmatpush.msra.mxu0 0.0
    %1151 = vmatpush.msra.mxu0 %v1139
    %1152 = vmatpush.msra.mxu0 %v1130
    %1153 = vmatpush.msra.mxu0 %v1129
    %1154 = vmatpush.msra.mxu0 %v1128
    %1155 = vmatpush.msra.mxu0 %v1127
    %1156 = vmatpush.msra.mxu0 %v1126
    %1157 = vmatmul.f32.gmra.mxu0 %v1133
    %v1158 = vpop.f32.mrf.mxu0
    %v1159 = vadd.f32 0.0, %v1158
    %1160 = vmatmul.f32.gmra.mxu0 %v1136
    %v1161 = vpop.f32.mrf.mxu0
    %v1162 = vadd.f32 0.0, %v1161
    %1163 = vdwg.mxu0
    %v1164 = vadd.f32 %v1088, %v1159
    %v1165 = vadd.f32 %v1091, %v1162
    %v1166 = vld [vmem:[%s12] sm:$0x1]
    %v1167 = vld [vmem:[%s13] sm:$0x1]
    %v1168 = vld [vmem:[#allocation12] sm:$0xff]
    %v1169 = vld [vmem:[#allocation12 + $0x8] sm:$0xff]
    %v1170 = vld [vmem:[#allocation12 + $0x10] sm:$0xff]
    %v1171 = vld [vmem:[#allocation12 + $0x18] sm:$0xff]
    %v1172 = vld [vmem:[#allocation12 + $0x20] sm:$0xff]
    %v1173 = vld [vmem:[#allocation12 + $0x28] sm:$0xff]
    %v1174 = vld [vmem:[#allocation12 + $0x30] sm:$0xff]
    %v1175 = vld [vmem:[#allocation12 + $0x38] sm:$0xff]
    %v1176 = vld [vmem:[#allocation12 + $0x40] sm:$0xff]
    %v1177 = vld [vmem:[#allocation12 + $0x48] sm:$0xff]
    %v1178 = vld [vmem:[#allocation14] sm:$0xff]
    %v1179 = vld [vmem:[#allocation14 + $0x8] sm:$0xff]
    %vm1180 = vcmask 654336
    %v1181 = vsel %vm1180, %v1164, 0.0
    %vm1182 = vcmask 648192
    %v1183 = vsel %vm1182, %v1165, 0.0
    %v1184 = vadd.f32 %v1181, %v1183
    %v1185 = vrot.slane %v1184, 4
    %v1186 = vadd.f32 %v1184, %v1185
    %v1187 = vrot.slane %v1186, 2
    %v1188 = vadd.f32 %v1186, %v1187
    %v1189 = vrot.slane %v1188, 1
    %v1190 = vadd.f32 %v1188, %v1189
    %v1192 = vsel %vm1180, %v1190, 0
    %1194 = vmatpush.msra.mxu0 0.0
    %1195 = vmatpush.msra.mxu0 0.0
    %1196 = vmatpush.msra.mxu0 0.0
    %1197 = vmatpush.msra.mxu0 0.0
    %1198 = vmatpush.msra.mxu0 0.0
    %1199 = vmatpush.msra.mxu0 0.0
    %1200 = vmatpush.msra.mxu0 %v1177
    %1201 = vmatpush.msra.mxu0 %v1176
    %1202 = vmatpush.msra.mxu0 %v1175
    %1203 = vmatpush.msra.mxu0 %v1174
    %1204 = vmatpush.msra.mxu0 %v1173
    %1205 = vmatpush.msra.mxu0 %v1172
    %1206 = vmatpush.msra.mxu0 %v1171
    %1207 = vmatpush.msra.mxu0 %v1170
    %1208 = vmatpush.msra.mxu0 %v1169
    %1209 = vmatpush.msra.mxu0 %v1168
    %1210 = vmatmul.f32.gmra.mxu0 %v1192
    %v1211 = vpop.f32.mrf.mxu0
    %v1212 = vadd.f32 0.0, %v1211
    %1213 = vdwg.mxu0
    %v1214 = vmul.f32 %v1164, %v1164
    %v1215 = vmul.f32 %v1165, %v1165
    %v1216 = vsel %vm1180, %v1214, 0.0
    %v1217 = vsel %vm1182, %v1215, 0.0
    %v1218 = vadd.f32 %v1216, %v1217
    %v1219 = vrot.slane %v1218, 4
    %v1220 = vadd.f32 %v1218, %v1219
    %v1221 = vrot.slane %v1220, 2
    %v1222 = vadd.f32 %v1220, %v1221
    %v1223 = vrot.slane %v1222, 1
    %v1224 = vadd.f32 %v1222, %v1223
    %v1226 = vsel %vm1180, %v1224, 0
    %1228 = vmatpush.msra.mxu0 0.0
    %1229 = vmatpush.msra.mxu0 0.0
    %1230 = vmatpush.msra.mxu0 0.0
    %1231 = vmatpush.msra.mxu0 0.0
    %1232 = vmatpush.msra.mxu0 0.0
    %1233 = vmatpush.msra.mxu0 0.0
    %1234 = vmatpush.msra.mxu0 %v1177
    %1235 = vmatpush.msra.mxu0 %v1176
    %1236 = vmatpush.msra.mxu0 %v1175
    %1237 = vmatpush.msra.mxu0 %v1174
    %1238 = vmatpush.msra.mxu0 %v1173
    %1239 = vmatpush.msra.mxu0 %v1172
    %1240 = vmatpush.msra.mxu0 %v1171
    %1241 = vmatpush.msra.mxu0 %v1170
    %1242 = vmatpush.msra.mxu0 %v1169
    %1243 = vmatpush.msra.mxu0 %v1168
    %1244 = vmatmul.f32.gmra.mxu0 %v1226
    %v1245 = vpop.f32.mrf.mxu0
    %v1246 = vadd.f32 0.0, %v1245
    %1247 = vdwg.mxu0
    %v1248 = vrcp.pop 50.0
    %v1249 = vmul.f32 50.0, %v1248
    %v1250 = vsub.f32 1.0, %v1249
    %v1251 = vmul.f32 %v1248, %v1250
    %v1252 = vadd.f32 %v1248, %v1251
    %vm1253 = vweird.f32 %v1248
    %v1254 = vsel %vm1253, %v1248, %v1252
    %v1255 = vmul.f32 %v1212, %v1254
    %v1256 = vmul.f32 %v1246, %v1254
    %v1257 = vmul.f32 %v1255, %v1255
    %v1258 = vsub.f32 %v1256, %v1257
    %v1259 = vadd.f32 %v1258, 1e-05
    %v1260 = vrsqrt.pop %v1259
    %v1261 = vmul.f32 %v1260, %v1259
    %v1262 = vmul.f32 %v1261, %v1260
    %v1263 = vmul.f32 0.5, %v1262
    %v1264 = vsub.f32 1.5, %v1263
    %v1265 = vmul.f32 %v1260, %v1264
    %vm1266 = vweird.f32 %v1259
    %vm1267 = vweird.f32 %v1260
    %vm1268 = vmor %vm1266, %vm1267
    %v1269 = vsel %vm1268, %v1260, %v1265
    %v1270 = vmul.f32 %v1166, %v1269
    %v1271 = vmul.f32 %v1255, %v1270
    %v1272 = vsub.f32 %v1167, %v1271
    %vm1273 = vcmask 130048
    %v1275 = vsel %vm1273, %v1270, 0
    %1277 = vmatpush.msra.mxu0 0.0
    %1278 = vmatpush.msra.mxu0 0.0
    %1279 = vmatpush.msra.mxu0 0.0
    %1280 = vmatpush.msra.mxu0 0.0
    %1281 = vmatpush.msra.mxu0 0.0
    %1282 = vmatpush.msra.mxu0 0.0
    %1283 = vmatpush.msra.mxu0 0.0
    %1284 = vmatpush.msra.mxu0 0.0
    %1285 = vmatpush.msra.mxu0 0.0
    %1286 = vmatpush.msra.mxu0 0.0
    %1287 = vmatpush.msra.mxu0 0.0
    %1288 = vmatpush.msra.mxu0 0.0
    %1289 = vmatpush.msra.mxu0 0.0
    %1290 = vmatpush.msra.mxu0 0.0
    %1291 = vmatpush.msra.mxu0 %v1179
    %1292 = vmatpush.msra.mxu0 %v1178
    %1293 = vmatmul.f32.gmra.mxu0 %v1275
    %v1294 = vpop.f32.mrf.mxu0
    %v1295 = vadd.f32 0.0, %v1294
    %1296 = vdwg.mxu0
    %v1297 = vperm.slane %v1295, 0
    %v1298 = vmul.f32 %v1164, %v1297
    %v1299 = vmul.f32 %v1165, %v1297
    %v1301 = vsel %vm1273, %v1272, 0
    %1303 = vmatpush.msra.mxu0 0.0
    %1304 = vmatpush.msra.mxu0 0.0
    %1305 = vmatpush.msra.mxu0 0.0
    %1306 = vmatpush.msra.mxu0 0.0
    %1307 = vmatpush.msra.mxu0 0.0
    %1308 = vmatpush.msra.mxu0 0.0
    %1309 = vmatpush.msra.mxu0 0.0
    %1310 = vmatpush.msra.mxu0 0.0
    %1311 = vmatpush.msra.mxu0 0.0
    %1312 = vmatpush.msra.mxu0 0.0
    %1313 = vmatpush.msra.mxu0 0.0
    %1314 = vmatpush.msra.mxu0 0.0
    %1315 = vmatpush.msra.mxu0 0.0
    %1316 = vmatpush.msra.mxu0 0.0
    %1317 = vmatpush.msra.mxu0 %v1179
    %1318 = vmatpush.msra.mxu0 %v1178
    %1319 = vmatmul.f32.gmra.mxu0 %v1301
    %v1320 = vpop.f32.mrf.mxu0
    %v1321 = vadd.f32 0.0, %v1320
    %1322 = vdwg.mxu0
    %v1323 = vperm.slane %v1321, 0
    %v1324 = vadd.f32 %v1298, %v1323
    %v1325 = vadd.f32 %v1299, %v1323
    %vm1326 = vcmp.ge.f32.partialorder %v1324, 0.0
    %vm1327 = vcmp.ge.f32.partialorder %v1325, 0.0
    %v1328 = vstv %s239
    %v1329 = vmul.f32 %v1328, %v1324
    %v1330 = vmul.f32 %v1328, %v1325
    %v1331 = vsel %vm1326, %v1324, %v1329
    %v1332 = vsel %vm1327, %v1325, %v1330
    %v1333 = vld [vmem:[#allocation15] sm:$0xff]
    %vm1334 = vcmask 80896
    %v1336 = vsel %vm1334, %v1333, 0
    %v1339 = vsel %vm1034, %v1332, 0
    %1341 = vmatpush.msra.mxu0 0.0
    %1342 = vmatpush.msra.mxu0 0.0
    %1343 = vmatpush.msra.mxu0 0.0
    %1344 = vmatpush.msra.mxu0 0.0
    %1345 = vmatpush.msra.mxu0 0.0
    %1346 = vmatpush.msra.mxu0 0.0
    %1347 = vmatpush.msra.mxu0 0.0
    %1348 = vmatpush.msra.mxu0 0.0
    %1349 = vmatpush.msra.mxu0 0.0
    %1350 = vmatpush.msra.mxu0 0.0
    %1351 = vmatpush.msra.mxu0 0.0
    %1352 = vmatpush.msra.mxu0 0.0
    %1353 = vmatpush.msra.mxu0 0.0
    %1354 = vmatpush.msra.mxu0 0.0
    %1355 = vmatpush.msra.mxu0 %v1339
    %1356 = vmatpush.msra.mxu0 %v1331
    %1357 = vmatmul.f32.gmra.mxu0 %v1336
    %v1358 = vpop.f32.mrf.mxu0
    %v1359 = vadd.f32 0.0, %v1358
    %1360 = vdwg.mxu0
    %v1361 = vld [vmem:[#allocation17] sm:$0xff]
    %v1362 = vld [vmem:[#allocation17 + $0x8] sm:$0xff]
    %v1363 = vld [vmem:[#allocation17 + $0x10] sm:$0xff]
    %v1364 = vld [vmem:[#allocation17 + $0x18] sm:$0xff]
    %v1365 = vld [vmem:[#allocation17 + $0x20] sm:$0xff]
    %v1366 = vld [vmem:[#allocation17 + $0x28] sm:$0xff]
    %v1367 = vld [vmem:[#allocation17 + $0x30] sm:$0xff]
    %v1368 = vld [vmem:[#allocation17 + $0x38] sm:$0xff]
    %v1369 = vld [vmem:[#allocation17 + $0x40] sm:$0xff]
    %v1370 = vld [vmem:[#allocation17 + $0x48] sm:$0xff]
    %v1371 = vld [vmem:[#allocation17 + $0x50] sm:$0xff]
    %v1372 = vld [vmem:[#allocation17 + $0x58] sm:$0xff]
    %v1373 = vld [vmem:[#allocation17 + $0x60] sm:$0xff]
    %v1374 = vld [vmem:[#allocation17 + $0x68] sm:$0xff]
    %v1375 = vld [vmem:[#allocation17 + $0x70] sm:$0xff]
    %v1376 = vld [vmem:[#allocation17 + $0x78] sm:$0xff]
    %v1377 = vld [vmem:[#allocation17 + $0x80] sm:$0xff]
    %v1378 = vld [vmem:[#allocation17 + $0x88] sm:$0xff]
    %v1379 = vld [vmem:[#allocation17 + $0x90] sm:$0xff]
    %v1380 = vld [vmem:[#allocation17 + $0x98] sm:$0xff]
    %s1381 = scalar_lea.vmem [#allocation15], 8
    %v1382 = vld [vmem:[%s1381] sm:$0xff]
    %v1384 = vsel %vm1334, %v1382, 0
    %1386 = vmatpush.msra.mxu0 0.0
    %1387 = vmatpush.msra.mxu0 0.0
    %1388 = vmatpush.msra.mxu0 0.0
    %1389 = vmatpush.msra.mxu0 0.0
    %1390 = vmatpush.msra.mxu0 0.0
    %1391 = vmatpush.msra.mxu0 0.0
    %1392 = vmatpush.msra.mxu0 0.0
    %1393 = vmatpush.msra.mxu0 0.0
    %1394 = vmatpush.msra.mxu0 0.0
    %1395 = vmatpush.msra.mxu0 0.0
    %1396 = vmatpush.msra.mxu0 0.0
    %1397 = vmatpush.msra.mxu0 0.0
    %1398 = vmatpush.msra.mxu0 0.0
    %1399 = vmatpush.msra.mxu0 0.0
    %1400 = vmatpush.msra.mxu0 %v1339
    %1401 = vmatpush.msra.mxu0 %v1331
    %1402 = vmatmul.f32.gmra.mxu0 %v1384
    %v1403 = vpop.f32.mrf.mxu0
    %v1404 = vadd.f32 0.0, %v1403
    %1405 = vdwg.mxu0
    %s1406 = scalar_lea.vmem [#allocation17], 160
    %v1407 = vld [vmem:[%s1406] sm:$0xff]
    %v1408 = vld [vmem:[%s1406 + $0x8] sm:$0xff]
    %v1409 = vld [vmem:[%s1406 + $0x10] sm:$0xff]
    %v1410 = vld [vmem:[%s1406 + $0x18] sm:$0xff]
    %v1411 = vld [vmem:[%s1406 + $0x20] sm:$0xff]
    %v1412 = vld [vmem:[%s1406 + $0x28] sm:$0xff]
    %v1413 = vld [vmem:[%s1406 + $0x30] sm:$0xff]
    %v1414 = vld [vmem:[%s1406 + $0x38] sm:$0xff]
    %v1415 = vld [vmem:[%s1406 + $0x40] sm:$0xff]
    %v1416 = vld [vmem:[%s1406 + $0x48] sm:$0xff]
    %v1417 = vld [vmem:[%s1406 + $0x50] sm:$0xff]
    %v1418 = vld [vmem:[%s1406 + $0x58] sm:$0xff]
    %v1419 = vld [vmem:[%s1406 + $0x60] sm:$0xff]
    %v1420 = vld [vmem:[%s1406 + $0x68] sm:$0xff]
    %v1421 = vld [vmem:[%s1406 + $0x70] sm:$0xff]
    %v1422 = vld [vmem:[%s1406 + $0x78] sm:$0xff]
    %v1423 = vld [vmem:[%s1406 + $0x80] sm:$0xff]
    %v1424 = vld [vmem:[%s1406 + $0x88] sm:$0xff]
    %v1425 = vld [vmem:[%s1406 + $0x90] sm:$0xff]
    %v1426 = vld [vmem:[%s1406 + $0x98] sm:$0xff]
    %v1428 = vsel %vm1180, %v1404, 0
    %1430 = vmatpush.msra.mxu0 0.0
    %1431 = vmatpush.msra.mxu0 0.0
    %1432 = vmatpush.msra.mxu0 0.0
    %1433 = vmatpush.msra.mxu0 0.0
    %1434 = vmatpush.msra.mxu0 0.0
    %1435 = vmatpush.msra.mxu0 0.0
    %1436 = vmatpush.msra.mxu0 %v1425
    %1437 = vmatpush.msra.mxu0 %v1423
    %1438 = vmatpush.msra.mxu0 %v1421
    %1439 = vmatpush.msra.mxu0 %v1419
    %1440 = vmatpush.msra.mxu0 %v1417
    %1441 = vmatpush.msra.mxu0 %v1415
    %1442 = vmatpush.msra.mxu0 %v1413
    %1443 = vmatpush.msra.mxu0 %v1411
    %1444 = vmatpush.msra.mxu0 %v1409
    %1445 = vmatpush.msra.mxu0 %v1407
    %1446 = vmatmul.f32.gmra.mxu0 %v1428
    %v1447 = vpop.f32.mrf.mxu0
    %v1448 = vadd.f32 0.0, %v1447
    %1449 = vdwg.mxu0
    %1450 = vmatpush.msra.mxu0 0.0
    %1451 = vmatpush.msra.mxu0 0.0
    %1452 = vmatpush.msra.mxu0 0.0
    %1453 = vmatpush.msra.mxu0 0.0
    %1454 = vmatpush.msra.mxu0 0.0
    %1455 = vmatpush.msra.mxu0 0.0
    %1456 = vmatpush.msra.mxu0 %v1426
    %1457 = vmatpush.msra.mxu0 %v1424
    %1458 = vmatpush.msra.mxu0 %v1422
    %1459 = vmatpush.msra.mxu0 %v1420
    %1460 = vmatpush.msra.mxu0 %v1418
    %1461 = vmatpush.msra.mxu0 %v1416
    %1462 = vmatpush.msra.mxu0 %v1414
    %1463 = vmatpush.msra.mxu0 %v1412
    %1464 = vmatpush.msra.mxu0 %v1410
    %1465 = vmatpush.msra.mxu0 %v1408
    %1466 = vmatmul.f32.gmra.mxu0 %v1428
    %v1467 = vpop.f32.mrf.mxu0
    %v1468 = vadd.f32 0.0, %v1467
    %1469 = vdwg.mxu0
    %v1471 = vsel %vm1180, %v1359, 0
    %1473 = vmatpush.msra.mxu0 0.0
    %1474 = vmatpush.msra.mxu0 0.0
    %1475 = vmatpush.msra.mxu0 0.0
    %1476 = vmatpush.msra.mxu0 0.0
    %1477 = vmatpush.msra.mxu0 0.0
    %1478 = vmatpush.msra.mxu0 0.0
    %1479 = vmatpush.msra.mxu0 %v1379
    %1480 = vmatpush.msra.mxu0 %v1377
    %1481 = vmatpush.msra.mxu0 %v1375
    %1482 = vmatpush.msra.mxu0 %v1373
    %1483 = vmatpush.msra.mxu0 %v1371
    %1484 = vmatpush.msra.mxu0 %v1369
    %1485 = vmatpush.msra.mxu0 %v1367
    %1486 = vmatpush.msra.mxu0 %v1365
    %1487 = vmatpush.msra.mxu0 %v1363
    %1488 = vmatpush.msra.mxu0 %v1361
    %1489 = vmatmul.f32.gmra.mxu0 %v1471
    %v1490 = vpop.f32.mrf.mxu0
    %v1491 = vadd.f32 %v1448, %v1490
    %1492 = vdwg.mxu0
    %1493 = vmatpush.msra.mxu0 0.0
    %1494 = vmatpush.msra.mxu0 0.0
    %1495 = vmatpush.msra.mxu0 0.0
    %1496 = vmatpush.msra.mxu0 0.0
    %1497 = vmatpush.msra.mxu0 0.0
    %1498 = vmatpush.msra.mxu0 0.0
    %1499 = vmatpush.msra.mxu0 %v1380
    %1500 = vmatpush.msra.mxu0 %v1378
    %1501 = vmatpush.msra.mxu0 %v1376
    %1502 = vmatpush.msra.mxu0 %v1374
    %1503 = vmatpush.msra.mxu0 %v1372
    %1504 = vmatpush.msra.mxu0 %v1370
    %1505 = vmatpush.msra.mxu0 %v1368
    %1506 = vmatpush.msra.mxu0 %v1366
    %1507 = vmatpush.msra.mxu0 %v1364
    %1508 = vmatpush.msra.mxu0 %v1362
    %1509 = vmatmul.f32.gmra.mxu0 %v1471
    %v1510 = vpop.f32.mrf.mxu0
    %v1511 = vadd.f32 %v1468, %v1510
    %1512 = vdwg.mxu0
    %s1513 = scalar_lea.vmem [#allocation15], 16
    %v1514 = vld [vmem:[%s1513] sm:$0xff]
    %v1516 = vsel %vm1334, %v1514, 0
    %1518 = vmatpush.msra.mxu0 0.0
    %1519 = vmatpush.msra.mxu0 0.0
    %1520 = vmatpush.msra.mxu0 0.0
    %1521 = vmatpush.msra.mxu0 0.0
    %1522 = vmatpush.msra.mxu0 0.0
    %1523 = vmatpush.msra.mxu0 0.0
    %1524 = vmatpush.msra.mxu0 0.0
    %1525 = vmatpush.msra.mxu0 0.0
    %1526 = vmatpush.msra.mxu0 0.0
    %1527 = vmatpush.msra.mxu0 0.0
    %1528 = vmatpush.msra.mxu0 0.0
    %1529 = vmatpush.msra.mxu0 0.0
    %1530 = vmatpush.msra.mxu0 0.0
    %1531 = vmatpush.msra.mxu0 0.0
    %1532 = vmatpush.msra.mxu0 %v1339
    %1533 = vmatpush.msra.mxu0 %v1331
    %1534 = vmatmul.f32.gmra.mxu0 %v1516
    %v1535 = vpop.f32.mrf.mxu0
    %v1536 = vadd.f32 0.0, %v1535
    %1537 = vdwg.mxu0
    %s1538 = scalar_lea.vmem [#allocation17], 320
    %v1539 = vld [vmem:[%s1538] sm:$0xff]
    %v1540 = vld [vmem:[%s1538 + $0x8] sm:$0xff]
    %v1541 = vld [vmem:[%s1538 + $0x10] sm:$0xff]
    %v1542 = vld [vmem:[%s1538 + $0x18] sm:$0xff]
    %v1543 = vld [vmem:[%s1538 + $0x20] sm:$0xff]
    %v1544 = vld [vmem:[%s1538 + $0x28] sm:$0xff]
    %v1545 = vld [vmem:[%s1538 + $0x30] sm:$0xff]
    %v1546 = vld [vmem:[%s1538 + $0x38] sm:$0xff]
    %v1547 = vld [vmem:[%s1538 + $0x40] sm:$0xff]
    %v1548 = vld [vmem:[%s1538 + $0x48] sm:$0xff]
    %v1549 = vld [vmem:[%s1538 + $0x50] sm:$0xff]
    %v1550 = vld [vmem:[%s1538 + $0x58] sm:$0xff]
    %v1551 = vld [vmem:[%s1538 + $0x60] sm:$0xff]
    %v1552 = vld [vmem:[%s1538 + $0x68] sm:$0xff]
    %v1553 = vld [vmem:[%s1538 + $0x70] sm:$0xff]
    %v1554 = vld [vmem:[%s1538 + $0x78] sm:$0xff]
    %v1555 = vld [vmem:[%s1538 + $0x80] sm:$0xff]
    %v1556 = vld [vmem:[%s1538 + $0x88] sm:$0xff]
    %v1557 = vld [vmem:[%s1538 + $0x90] sm:$0xff]
    %v1558 = vld [vmem:[%s1538 + $0x98] sm:$0xff]
    %v1560 = vsel %vm1180, %v1536, 0
    %1562 = vmatpush.msra.mxu0 0.0
    %1563 = vmatpush.msra.mxu0 0.0
    %1564 = vmatpush.msra.mxu0 0.0
    %1565 = vmatpush.msra.mxu0 0.0
    %1566 = vmatpush.msra.mxu0 0.0
    %1567 = vmatpush.msra.mxu0 0.0
    %1568 = vmatpush.msra.mxu0 %v1557
    %1569 = vmatpush.msra.mxu0 %v1555
    %1570 = vmatpush.msra.mxu0 %v1553
    %1571 = vmatpush.msra.mxu0 %v1551
    %1572 = vmatpush.msra.mxu0 %v1549
    %1573 = vmatpush.msra.mxu0 %v1547
    %1574 = vmatpush.msra.mxu0 %v1545
    %1575 = vmatpush.msra.mxu0 %v1543
    %1576 = vmatpush.msra.mxu0 %v1541
    %1577 = vmatpush.msra.mxu0 %v1539
    %1578 = vmatmul.f32.gmra.mxu0 %v1560
    %v1579 = vpop.f32.mrf.mxu0
    %v1580 = vadd.f32 0.0, %v1579
    %1581 = vdwg.mxu0
    %1582 = vmatpush.msra.mxu0 0.0
    %1583 = vmatpush.msra.mxu0 0.0
    %1584 = vmatpush.msra.mxu0 0.0
    %1585 = vmatpush.msra.mxu0 0.0
    %1586 = vmatpush.msra.mxu0 0.0
    %1587 = vmatpush.msra.mxu0 0.0
    %1588 = vmatpush.msra.mxu0 %v1558
    %1589 = vmatpush.msra.mxu0 %v1556
    %1590 = vmatpush.msra.mxu0 %v1554
    %1591 = vmatpush.msra.mxu0 %v1552
    %1592 = vmatpush.msra.mxu0 %v1550
    %1593 = vmatpush.msra.mxu0 %v1548
    %1594 = vmatpush.msra.mxu0 %v1546
    %1595 = vmatpush.msra.mxu0 %v1544
    %1596 = vmatpush.msra.mxu0 %v1542
    %1597 = vmatpush.msra.mxu0 %v1540
    %1598 = vmatmul.f32.gmra.mxu0 %v1560
    %v1599 = vpop.f32.mrf.mxu0
    %v1600 = vadd.f32 0.0, %v1599
    %1601 = vdwg.mxu0
    %v1602 = vadd.f32 %v1491, %v1580
    %v1603 = vadd.f32 %v1511, %v1600
    %v1604 = vld [vmem:[%s18] sm:$0x3]
    %v1606 = vperm.slane %v1604, 0
    %v1607 = vperm.slane %v1604, 1
    %v1610 = vadd.f32 %v1602, %v1606
    %v1611 = vadd.f32 %v1603, %v1607
    %vm1612 = vcmp.ge.f32.partialorder %v1610, 0.0
    %vm1613 = vcmp.ge.f32.partialorder %v1611, 0.0
    %v1614 = vstv %s240
    %v1615 = vmul.f32 %v1614, %v1610
    %v1616 = vmul.f32 %v1614, %v1611
    %v1617 = vsel %vm1612, %v1610, %v1615
    %v1618 = vsel %vm1613, %v1611, %v1616
    %v1619 = vld [vmem:[%s19] sm:$0xff]
    %v1620 = vld [vmem:[%s19 + $0x8] sm:$0xff]
    %v1621 = vld [vmem:[%s19 + $0x10] sm:$0xff]
    %v1622 = vld [vmem:[%s19 + $0x18] sm:$0xff]
    %v1623 = vld [vmem:[%s19 + $0x20] sm:$0xff]
    %v1624 = vld [vmem:[%s19 + $0x28] sm:$0xff]
    %v1625 = vld [vmem:[%s19 + $0x30] sm:$0xff]
    %v1626 = vld [vmem:[%s19 + $0x38] sm:$0xff]
    %v1627 = vld [vmem:[%s19 + $0x40] sm:$0xff]
    %v1628 = vld [vmem:[%s19 + $0x48] sm:$0xff]
    %v1629 = vld [vmem:[%s19 + $0x50] sm:$0xff]
    %v1630 = vld [vmem:[%s19 + $0x58] sm:$0xff]
    %v1631 = vld [vmem:[%s19 + $0x60] sm:$0xff]
    %v1632 = vld [vmem:[%s19 + $0x68] sm:$0xff]
    %v1633 = vld [vmem:[%s19 + $0x70] sm:$0xff]
    %v1634 = vld [vmem:[%s19 + $0x78] sm:$0xff]
    %v1635 = vld [vmem:[%s19 + $0x80] sm:$0xff]
    %v1636 = vld [vmem:[%s19 + $0x88] sm:$0xff]
    %v1637 = vld [vmem:[%s19 + $0x90] sm:$0xff]
    %v1638 = vld [vmem:[%s19 + $0x98] sm:$0xff]
    %v1639 = vld [vmem:[%s19 + $0xa0] sm:$0xff]
    %v1640 = vld [vmem:[%s19 + $0xa8] sm:$0xff]
    %v1641 = vld [vmem:[%s19 + $0xb0] sm:$0xff]
    %v1642 = vld [vmem:[%s19 + $0xb8] sm:$0xff]
    %v1643 = vld [vmem:[%s20] sm:$0x1]
    %v1645 = vperm.slane %v1643, 0
    %vm1647 = vcmask 523264
    %v1649 = vsel %vm1647, %v1618, 0
    %1651 = vmatpush.msra.mxu0 %v1634
    %1652 = vmatpush.msra.mxu0 %v1633
    %1653 = vmatpush.msra.mxu0 %v1632
    %1654 = vmatpush.msra.mxu0 %v1631
    %1655 = vmatpush.msra.mxu0 %v1630
    %1656 = vmatpush.msra.mxu0 %v1629
    %1657 = vmatpush.msra.mxu0 %v1628
    %1658 = vmatpush.msra.mxu0 %v1627
    %1659 = vmatpush.msra.mxu0 %v1626
    %1660 = vmatpush.msra.mxu0 %v1625
    %1661 = vmatpush.msra.mxu0 %v1624
    %1662 = vmatpush.msra.mxu0 %v1623
    %1663 = vmatpush.msra.mxu0 %v1622
    %1664 = vmatpush.msra.mxu0 %v1621
    %1665 = vmatpush.msra.mxu0 %v1620
    %1666 = vmatpush.msra.mxu0 %v1619
    %1667 = vmatmul.f32.gmra.mxu0 %v1617
    %v1668 = vpop.f32.mrf.mxu0
    %v1669 = vadd.f32 %v1645, %v1668
    %1670 = vdwg.mxu0
    %1671 = vmatpush.msra.mxu0 0.0
    %1672 = vmatpush.msra.mxu0 0.0
    %1673 = vmatpush.msra.mxu0 0.0
    %1674 = vmatpush.msra.mxu0 0.0
    %1675 = vmatpush.msra.mxu0 0.0
    %1676 = vmatpush.msra.mxu0 0.0
    %1677 = vmatpush.msra.mxu0 0.0
    %1678 = vmatpush.msra.mxu0 0.0
    %1679 = vmatpush.msra.mxu0 %v1642
    %1680 = vmatpush.msra.mxu0 %v1641
    %1681 = vmatpush.msra.mxu0 %v1640
    %1682 = vmatpush.msra.mxu0 %v1639
    %1683 = vmatpush.msra.mxu0 %v1638
    %1684 = vmatpush.msra.mxu0 %v1637
    %1685 = vmatpush.msra.mxu0 %v1636
    %1686 = vmatpush.msra.mxu0 %v1635
    %1687 = vmatmul.f32.gmra.mxu0 %v1649
    %v1688 = vpop.f32.mrf.mxu0
    %v1689 = vadd.f32 %v1669, %v1688
    %1690 = vdwg.mxu0
    %v1691 = vld [vmem:[#allocation18] sm:$0x1]
    %vm1692 = vcmp.gt.f32.partialorder %v1691, 0.5
    %v1693 = vxor.u32 %v1689, 2147483648
    %v1694 = vmul.f32 %v1693, 1.442695
    %v1695 = vpow.pop %v1694
    %v1696 = vadd.f32 %v1695, 1.0
    %v1697 = vrcp.pop %v1696
    %v1698 = vmul.f32 %v1696, %v1697
    %v1699 = vsub.f32 1.0, %v1698
    %v1700 = vmul.f32 %v1697, %v1699
    %v1701 = vadd.f32 %v1697, %v1700
    %vm1702 = vweird.f32 %v1696
    %vm1703 = vweird.f32 %v1697
    %vm1704 = vmor %vm1702, %vm1703
    %v1705 = vsel %vm1704, %v1697, %v1701
    %v1706 = vand.u32 2147483647, %v1696
    %vm1707 = vcmp.eq.f32.partialorder %v1706, 8.507059e+37
    %v1708 = vand.u32 %v1696, 2147483648
    %v1709 = vor.u32 1.1754944e-38, %v1708
    %v1710 = vsel %vm1707, %v1709, %v1705
    %v1711 = vmul.f32 1.0, %v1710
    %v1712 = vsel %vm1692, 1, 0
    %v1713 = vperm.slane %v1712, 0
    %vm1714 = vcmp.eq.s32.totalorder %v1713, 1
    %v1715 = vsel %vm1714, %v1711, %v1689
    %1716 = vst [vmem:[%s22] sm:$0xff] %v1715
    // Predicated region
    $region134: #{_lambda_.1} parent=1 // pred_check
      _
    $region135: #{_lambda_.1} parent=1 // pred_check_branch
      %1718 = sbr.rel (0) target = $region137
    $region136: #{_lambda_.1} parent=1 // pred_region
      _
    $region137: #{_lambda_.1} parent=1 // pred_fallthru
      _
    // Predicated region
    $region138: #{_lambda_.1} parent=1 // pred_check
      _
    $region139: #{_lambda_.1} parent=1 // pred_check_branch
      %1720 = sbr.rel (0) target = $region141
    $region140: #{_lambda_.1} parent=1 // pred_region
      _
    $region141: #{_lambda_.1} parent=1 // pred_fallthru
      _
    %1721 = vsyncpa [#allocation3], 1
    %1722 = vsyncpa [#allocation7], 1
    %1723 = vsyncpa [#allocation10], 1
    %1724 = vsyncpa [#allocation13], 1
    %1725 = vsyncpa [#allocation16], 1
    %1726 = vsyncpa [#allocation19], 1
    %1727 = vsyncpa [#allocation4], 1

</llo_original>
